<compile_context>
chip_gen: v7x
topology: tpu7x:2x2x1
jax: 0.10.0
libtpu: 0.0.40
codegen_flags: <defaults>
</compile_context>

<pallas_src>
import functools

import numpy as np
import jax
import jax.numpy as jnp
from jax import lax
from jax.experimental import pallas as pl
from jax.experimental.pallas import tpu as pltpu


# ---------------------------------------------------------------------------
# make_scale (same semantics as the PyTorch module)
# ---------------------------------------------------------------------------
def make_scale(in_c, out_c):
    multiple = out_c // in_c
    msq = multiple ** 0.5
    if msq == int(msq):
        return (int(msq), int(msq))
    return (multiple, 1)


# ---------------------------------------------------------------------------
# Bilinear interpolation matrix (torch.nn.Upsample, mode='bilinear',
# align_corners=False) along one axis.
# ---------------------------------------------------------------------------
def _bilinear_matrix(in_size: int, out_size: int) -> np.ndarray:
    scale = in_size / out_size
    o = np.arange(out_size)
    src = np.maximum(0.0, scale * (o + 0.5) - 0.5)
    i0 = np.minimum(np.floor(src).astype(np.int64), in_size - 1)
    frac = (src - i0).astype(np.float32)
    i1 = np.minimum(i0 + 1, in_size - 1)
    m = np.zeros((out_size, in_size), np.float32)
    m[o, i0] += (1.0 - frac)
    m[o, i1] += frac
    return m


# ---------------------------------------------------------------------------
# Fused kernel: per batch element
#   t  = x_flat @ U^T                      (upsample, one MXU matmul)
#   xr = row-major channel view of t       (out_c, H*W)
#   y1 = x1 + Fm(x2); y2 = x2 + Gm(y1)     (AdditiveCoupling, roll+mask im2col)
# The 3x3 conv is a single (C, 9C) @ (9C, H*W) matmul; the 9 shifted copies of
# the input are lane rotations (XLU) times precomputed boundary masks.
# ---------------------------------------------------------------------------
def _fused_kernel(x_ref, u_ref, mask_ref, wf_ref, bf_ref, wg_ref, bg_ref, o_ref,
                  *, m, C, HW, KH, KW, W):
    # x_ref: (1, in_c, HW); u_ref: (HW, m*HW); mask_ref: (KH*KW, HW)
    # wf/wg: (C, KH*KW*C); bf/bg: (C, 1); o_ref: (1, 2C, HW)

    # ---- bilinear upsample (+ implicit channel view), one MXU matmul ----
    x = x_ref[0].astype(jnp.float32)                                # (in_c, HW)
    t = jnp.dot(x, u_ref[...], preferred_element_type=jnp.float32)  # (in_c, m*HW)

    # Row-major "view": view channel c = ci*m + j is lane-chunk j of row ci.
    # TODO(synk): at large out_c replace the per-row slice+concat assembly with
    # a strided sublane store / tile-aligned reshape.
    def view_row(c):
        ci, j = divmod(c, m)
        return t[ci:ci + 1, j * HW:(j + 1) * HW]                    # (1, HW)

    x1 = jnp.concatenate([view_row(c) for c in range(C)], axis=0)          # (C, HW)
    x2 = jnp.concatenate([view_row(c) for c in range(C, 2 * C)], axis=0)   # (C, HW)

    # ---- per-tap (lane rotation, precomputed boundary mask) ----
    masks = mask_ref[...]                                           # (KH*KW, HW) f32
    taps = []
    for kh in range(KH):
        for kw in range(KW):
            dh, dw = kh - KH // 2, kw - KW // 2
            off = dh * W + dw
            msk = None if off == 0 else masks[kh * KW + kw:kh * KW + kw + 1, :]
            taps.append(((-off) % HW, msk))

    def conv3x3(z, w_ref, b_ref):
        # z: (C, HW) f32.  Build the (9C, HW) patch matrix: per tap a lane roll
        # (XLU) + mask multiply (VPU); concat along sublanes is tile-aligned.
        cols = []
        for shift, msk in taps:
            zt = z if shift == 0 else pltpu.roll(z, shift=shift, axis=1)
            if msk is not None:
                zt = zt * msk
            cols.append(zt)
        patches = jnp.concatenate(cols, axis=0)                     # (KH*KW*C, HW)
        return jnp.dot(w_ref[...], patches,
                       preferred_element_type=jnp.float32) + b_ref[...]

    # memcnn AdditiveCoupling forward.
    y1 = x1 + conv3x3(x2, wf_ref, bf_ref)                           # (C, HW)
    o_ref[0, :C, :] = y1.astype(o_ref.dtype)
    y2 = x2 + conv3x3(y1, wg_ref, bg_ref)
    o_ref[0, C:, :] = y2.astype(o_ref.dtype)


# ---------------------------------------------------------------------------
# Full UpInvertibleBlock forward (single fused pallas_call)
# ---------------------------------------------------------------------------
def up_invertible_block_forward(x, params, in_c, out_c, conv_param=(3, 1, 1, 1, 1)):
    k, s, p, d, g = conv_param
    # TODO(synk): only the spatial-size-preserving config (3,1,1,1,1) is
    # implemented (the one required for the block to be invertible).
    assert (k, s, p, d, g) == (3, 1, 1, 1, 1)
    B, xc, H, W = x.shape
    assert xc == in_c
    assert out_c % 2 == 0, "out_c must be even for memcnn AdditiveCoupling"
    sh, sw = make_scale(in_c, out_c)
    m = sh * sw
    assert in_c * m == out_c, "view(B, out_c, H, W) requires in_c*sh*sw == out_c"
    C = out_c // 2
    HW = H * W
    KH = KW = k

    # Folded upsample operator U[q, kk] = WH[oh, ih] * WW[ow, iw]  (q=oh*OW+ow,
    # kk=ih*W+iw), passed transposed so t = x_flat @ U^T.
    wh_mat = _bilinear_matrix(H, H * sh)          # (OH, H)
    ww_mat = _bilinear_matrix(W, W * sw)          # (OW, W)
    u_t = jnp.asarray(np.kron(wh_mat, ww_mat).T)  # (HW, m*HW), f32

    # Precomputed 3x3 zero-padding boundary masks, tap-major (center = ones).
    masks_np = np.ones((KH * KW, HW), np.float32)
    row_idx, col_idx = np.divmod(np.arange(HW), W)
    for kh in range(KH):
        for kw in range(KW):
            dh, dw = kh - KH // 2, kw - KW // 2
            valid = ((row_idx + dh >= 0) & (row_idx + dh < H) &
                     (col_idx + dw >= 0) & (col_idx + dw < W))
            masks_np[kh * KW + kw] = valid.astype(np.float32)
    masks = jnp.asarray(masks_np)

    # Conv weights in tap-major layout (Cout, (kh*KW+kw)*Cin + ci), matching the
    # patch matrix built inside the kernel.
    wf_mat = jnp.transpose(params["wf"], (0, 2, 3, 1)).reshape(C, KH * KW * C).astype(jnp.float32)
    wg_mat = jnp.transpose(params["wg"], (0, 2, 3, 1)).reshape(C, KH * KW * C).astype(jnp.float32)
    bf_col = params["bf"].reshape(C, 1).astype(jnp.float32)
    bg_col = params["bg"].reshape(C, 1).astype(jnp.float32)

    xf = x.reshape(B, in_c, HW)                   # free row-major HBM reshape

    out = pl.pallas_call(
        functools.partial(_fused_kernel, m=m, C=C, HW=HW, KH=KH, KW=KW, W=W),
        out_shape=jax.ShapeDtypeStruct((B, out_c, HW), x.dtype),
        grid=(B,),
        in_specs=[
            pl.BlockSpec((1, in_c, HW), lambda b: (b, 0, 0)),
            pl.BlockSpec((HW, m * HW), lambda b: (0, 0)),         # constant: DMA'd once
            pl.BlockSpec((KH * KW, HW), lambda b: (0, 0)),        # constant
            pl.BlockSpec((C, KH * KW * C), lambda b: (0, 0)),     # constant
            pl.BlockSpec((C, 1), lambda b: (0, 0)),               # constant
            pl.BlockSpec((C, KH * KW * C), lambda b: (0, 0)),     # constant
            pl.BlockSpec((C, 1), lambda b: (0, 0)),               # constant
        ],
        out_specs=pl.BlockSpec((1, out_c, HW), lambda b: (b, 0, 0)),
        compiler_params=pltpu.CompilerParams(
            dimension_semantics=("parallel",),
            vmem_limit_bytes=32 * 1024 * 1024),
    )(xf, u_t, masks, wf_mat, bf_col, wg_mat, bg_col)
    return out.reshape(B, out_c, H, W)            # free reshape back to NCHW


# ---------------------------------------------------------------------------
# Pure-JAX reference (for correctness check)
# ---------------------------------------------------------------------------
def reference_forward(x, params, in_c, out_c):
    B, _, H, W = x.shape
    sh, sw = make_scale(in_c, out_c)
    wh = jnp.asarray(_bilinear_matrix(H, int(H * sh)))
    ww = jnp.asarray(_bilinear_matrix(W, int(W * sw)))
    up = jnp.einsum("oh,bchw,pw->bcop", wh, x, ww)
    xr = up.reshape(B, out_c, H, W)
    C = out_c // 2
    x1, x2 = xr[:, :C], xr[:, C:]

    def conv(z, w, b):
        y = lax.conv_general_dilated(z, w, (1, 1), [(1, 1), (1, 1)],
                                     dimension_numbers=("NCHW", "OIHW", "NCHW"))
        return y + b.reshape(1, -1, 1, 1)

    y1 = x1 + conv(x2, params["wf"], params["bf"])
    y2 = x2 + conv(y1, params["wg"], params["bg"])
    return jnp.concatenate([y1, y2], axis=1)


if __name__ == "__main__":
    B, in_c, H, W = 2, 4, 16, 16
    out_c = 16                       # multiple=4 -> bilinear scale (2, 2)
    conv_param = (3, 1, 1, 1, 1)
    C = out_c // 2
    kk = conv_param[0]

    key = jax.random.PRNGKey(0)
    kx, k1, k2, k3, k4 = jax.random.split(key, 5)
    x = jax.random.normal(kx, (B, in_c, H, W), jnp.float32)

    bound = 1.0 / np.sqrt(C * kk * kk)   # PyTorch Conv2d default init scale
    params = {
        "wf": jax.random.uniform(k1, (C, C, kk, kk), jnp.float32, -bound, bound),
        "bf": jax.random.uniform(k2, (C,), jnp.float32, -bound, bound),
        "wg": jax.random.uniform(k3, (C, C, kk, kk), jnp.float32, -bound, bound),
        "bg": jax.random.uniform(k4, (C,), jnp.float32, -bound, bound),
    }

    fwd = jax.jit(lambda xx, pp: up_invertible_block_forward(xx, pp, in_c, out_c,
                                                             conv_param))
    out = jax.block_until_ready(fwd(x, params))

    ref = reference_forward(x, params, in_c, out_c)
    assert out.shape == (B, out_c, H, W), out.shape
    np.testing.assert_allclose(np.asarray(out), np.asarray(ref),
                               rtol=1e-3, atol=1e-3)
    print("KERNEL_OK")
</pallas_src>

<mosaic_0001>
module attributes {stable_mosaic.version = 11 : i64} {
  func.func @_fused_kernel(%arg0: i32, %arg1: memref<1x4x256xf32, #tpu.memory_space<vmem>>, %arg2: memref<256x1024xf32, #tpu.memory_space<vmem>>, %arg3: memref<9x256xf32, #tpu.memory_space<vmem>>, %arg4: memref<8x72xf32, #tpu.memory_space<vmem>>, %arg5: memref<8x1xf32, #tpu.memory_space<vmem>>, %arg6: memref<8x72xf32, #tpu.memory_space<vmem>>, %arg7: memref<8x1xf32, #tpu.memory_space<vmem>>, %arg8: memref<1x16x256xf32, #tpu.memory_space<vmem>>) attributes {dimension_semantics = [#tpu.dimension_semantics<parallel>], iteration_bounds = array<i64: 2>, scalar_prefetch = 0 : i64, scratch_operands = 0 : i64, tpu.core_type = #tpu.core_type<tc>, window_params = [{transform_indices = @transform_0, window_bounds = array<i64: 1, 4, 256>}, {pipeline_mode = #tpu.pipeline_mode<synchronous>, transform_indices = @transform_1, window_bounds = array<i64: 256, 1024>}, {pipeline_mode = #tpu.pipeline_mode<synchronous>, transform_indices = @transform_2, window_bounds = array<i64: 9, 256>}, {pipeline_mode = #tpu.pipeline_mode<synchronous>, transform_indices = @transform_3, window_bounds = array<i64: 8, 72>}, {pipeline_mode = #tpu.pipeline_mode<synchronous>, transform_indices = @transform_4, window_bounds = array<i64: 8, 1>}, {pipeline_mode = #tpu.pipeline_mode<synchronous>, transform_indices = @transform_5, window_bounds = array<i64: 8, 72>}, {pipeline_mode = #tpu.pipeline_mode<synchronous>, transform_indices = @transform_6, window_bounds = array<i64: 8, 1>}, {transform_indices = @transform_7, window_bounds = array<i64: 1, 16, 256>}]} {
    %c0 = arith.constant 0 : index
    %c0_0 = arith.constant 0 : index
    %c0_1 = arith.constant 0 : index
    %0 = vector.load %arg1[%c0, %c0_0, %c0_1] : memref<1x4x256xf32, #tpu.memory_space<vmem>>, vector<1x4x256xf32>
    %1 = vector.shape_cast %0 : vector<1x4x256xf32> to vector<4x256xf32>
    %c0_2 = arith.constant 0 : index
    %c0_3 = arith.constant 0 : index
    %2 = vector.load %arg2[%c0_2, %c0_3] : memref<256x1024xf32, #tpu.memory_space<vmem>>, vector<256x1024xf32>
    %cst = arith.constant dense<0.000000e+00> : vector<4x1024xf32>
    %3 = tpu.matmul %1, %2, %cst {dimension_numbers = #tpu.dot_dimension_numbers<[1], [0], [0], [1], [0, 0, 1, 1], [], []>} : vector<4x256xf32>, vector<256x1024xf32>, vector<4x1024xf32> -> vector<4x1024xf32>
    %4 = vector.extract_strided_slice %3 {offsets = [0, 0], sizes = [1, 256], strides = [1, 1]} : vector<4x1024xf32> to vector<1x256xf32>
    %5 = vector.extract_strided_slice %3 {offsets = [0, 256], sizes = [1, 256], strides = [1, 1]} : vector<4x1024xf32> to vector<1x256xf32>
    %6 = vector.extract_strided_slice %3 {offsets = [0, 512], sizes = [1, 256], strides = [1, 1]} : vector<4x1024xf32> to vector<1x256xf32>
    %7 = vector.extract_strided_slice %3 {offsets = [0, 768], sizes = [1, 256], strides = [1, 1]} : vector<4x1024xf32> to vector<1x256xf32>
    %8 = vector.extract_strided_slice %3 {offsets = [1, 0], sizes = [1, 256], strides = [1, 1]} : vector<4x1024xf32> to vector<1x256xf32>
    %9 = vector.extract_strided_slice %3 {offsets = [1, 256], sizes = [1, 256], strides = [1, 1]} : vector<4x1024xf32> to vector<1x256xf32>
    %10 = vector.extract_strided_slice %3 {offsets = [1, 512], sizes = [1, 256], strides = [1, 1]} : vector<4x1024xf32> to vector<1x256xf32>
    %11 = vector.extract_strided_slice %3 {offsets = [1, 768], sizes = [1, 256], strides = [1, 1]} : vector<4x1024xf32> to vector<1x256xf32>
    %12 = tpu.concatenate %4, %5, %6, %7, %8, %9, %10, %11 in 0 : vector<1x256xf32>, vector<1x256xf32>, vector<1x256xf32>, vector<1x256xf32>, vector<1x256xf32>, vector<1x256xf32>, vector<1x256xf32>, vector<1x256xf32> -> vector<8x256xf32>
    %13 = vector.extract_strided_slice %3 {offsets = [2, 0], sizes = [1, 256], strides = [1, 1]} : vector<4x1024xf32> to vector<1x256xf32>
    %14 = vector.extract_strided_slice %3 {offsets = [2, 256], sizes = [1, 256], strides = [1, 1]} : vector<4x1024xf32> to vector<1x256xf32>
    %15 = vector.extract_strided_slice %3 {offsets = [2, 512], sizes = [1, 256], strides = [1, 1]} : vector<4x1024xf32> to vector<1x256xf32>
    %16 = vector.extract_strided_slice %3 {offsets = [2, 768], sizes = [1, 256], strides = [1, 1]} : vector<4x1024xf32> to vector<1x256xf32>
    %17 = vector.extract_strided_slice %3 {offsets = [3, 0], sizes = [1, 256], strides = [1, 1]} : vector<4x1024xf32> to vector<1x256xf32>
    %18 = vector.extract_strided_slice %3 {offsets = [3, 256], sizes = [1, 256], strides = [1, 1]} : vector<4x1024xf32> to vector<1x256xf32>
    %19 = vector.extract_strided_slice %3 {offsets = [3, 512], sizes = [1, 256], strides = [1, 1]} : vector<4x1024xf32> to vector<1x256xf32>
    %20 = vector.extract_strided_slice %3 {offsets = [3, 768], sizes = [1, 256], strides = [1, 1]} : vector<4x1024xf32> to vector<1x256xf32>
    %21 = tpu.concatenate %13, %14, %15, %16, %17, %18, %19, %20 in 0 : vector<1x256xf32>, vector<1x256xf32>, vector<1x256xf32>, vector<1x256xf32>, vector<1x256xf32>, vector<1x256xf32>, vector<1x256xf32>, vector<1x256xf32> -> vector<8x256xf32>
    %c0_4 = arith.constant 0 : index
    %c0_5 = arith.constant 0 : index
    %22 = vector.load %arg3[%c0_4, %c0_5] : memref<9x256xf32, #tpu.memory_space<vmem>>, vector<9x256xf32>
    %23 = vector.extract_strided_slice %22 {offsets = [0, 0], sizes = [1, 256], strides = [1, 1]} : vector<9x256xf32> to vector<1x256xf32>
    %24 = vector.extract_strided_slice %22 {offsets = [1, 0], sizes = [1, 256], strides = [1, 1]} : vector<9x256xf32> to vector<1x256xf32>
    %25 = vector.extract_strided_slice %22 {offsets = [2, 0], sizes = [1, 256], strides = [1, 1]} : vector<9x256xf32> to vector<1x256xf32>
    %26 = vector.extract_strided_slice %22 {offsets = [3, 0], sizes = [1, 256], strides = [1, 1]} : vector<9x256xf32> to vector<1x256xf32>
    %27 = vector.extract_strided_slice %22 {offsets = [5, 0], sizes = [1, 256], strides = [1, 1]} : vector<9x256xf32> to vector<1x256xf32>
    %28 = vector.extract_strided_slice %22 {offsets = [6, 0], sizes = [1, 256], strides = [1, 1]} : vector<9x256xf32> to vector<1x256xf32>
    %29 = vector.extract_strided_slice %22 {offsets = [7, 0], sizes = [1, 256], strides = [1, 1]} : vector<9x256xf32> to vector<1x256xf32>
    %30 = vector.extract_strided_slice %22 {offsets = [8, 0], sizes = [1, 256], strides = [1, 1]} : vector<9x256xf32> to vector<1x256xf32>
    %c17_i32 = arith.constant 17 : i32
    %31 = tpu.dynamic_rotate %21 by %c17_i32 dim 1 : vector<8x256xf32>, i32 -> vector<8x256xf32>
    %32 = vector.broadcast %23 : vector<1x256xf32> to vector<8x256xf32>
    %33 = arith.mulf %31, %32 : vector<8x256xf32>
    %c16_i32 = arith.constant 16 : i32
    %34 = tpu.dynamic_rotate %21 by %c16_i32 dim 1 : vector<8x256xf32>, i32 -> vector<8x256xf32>
    %35 = vector.broadcast %24 : vector<1x256xf32> to vector<8x256xf32>
    %36 = arith.mulf %34, %35 : vector<8x256xf32>
    %c15_i32 = arith.constant 15 : i32
    %37 = tpu.dynamic_rotate %21 by %c15_i32 dim 1 : vector<8x256xf32>, i32 -> vector<8x256xf32>
    %38 = vector.broadcast %25 : vector<1x256xf32> to vector<8x256xf32>
    %39 = arith.mulf %37, %38 : vector<8x256xf32>
    %c1_i32 = arith.constant 1 : i32
    %40 = tpu.dynamic_rotate %21 by %c1_i32 dim 1 : vector<8x256xf32>, i32 -> vector<8x256xf32>
    %41 = vector.broadcast %26 : vector<1x256xf32> to vector<8x256xf32>
    %42 = arith.mulf %40, %41 : vector<8x256xf32>
    %c255_i32 = arith.constant 255 : i32
    %43 = tpu.dynamic_rotate %21 by %c255_i32 dim 1 : vector<8x256xf32>, i32 -> vector<8x256xf32>
    %44 = vector.broadcast %27 : vector<1x256xf32> to vector<8x256xf32>
    %45 = arith.mulf %43, %44 : vector<8x256xf32>
    %c241_i32 = arith.constant 241 : i32
    %46 = tpu.dynamic_rotate %21 by %c241_i32 dim 1 : vector<8x256xf32>, i32 -> vector<8x256xf32>
    %47 = vector.broadcast %28 : vector<1x256xf32> to vector<8x256xf32>
    %48 = arith.mulf %46, %47 : vector<8x256xf32>
    %c240_i32 = arith.constant 240 : i32
    %49 = tpu.dynamic_rotate %21 by %c240_i32 dim 1 : vector<8x256xf32>, i32 -> vector<8x256xf32>
    %50 = vector.broadcast %29 : vector<1x256xf32> to vector<8x256xf32>
    %51 = arith.mulf %49, %50 : vector<8x256xf32>
    %c239_i32 = arith.constant 239 : i32
    %52 = tpu.dynamic_rotate %21 by %c239_i32 dim 1 : vector<8x256xf32>, i32 -> vector<8x256xf32>
    %53 = vector.broadcast %30 : vector<1x256xf32> to vector<8x256xf32>
    %54 = arith.mulf %52, %53 : vector<8x256xf32>
    %55 = tpu.concatenate %33, %36, %39, %42, %21, %45, %48, %51, %54 in 0 : vector<8x256xf32>, vector<8x256xf32>, vector<8x256xf32>, vector<8x256xf32>, vector<8x256xf32>, vector<8x256xf32>, vector<8x256xf32>, vector<8x256xf32>, vector<8x256xf32> -> vector<72x256xf32>
    %c0_6 = arith.constant 0 : index
    %c0_7 = arith.constant 0 : index
    %56 = vector.load %arg4[%c0_6, %c0_7] : memref<8x72xf32, #tpu.memory_space<vmem>>, vector<8x72xf32>
    %cst_8 = arith.constant dense<0.000000e+00> : vector<8x256xf32>
    %57 = tpu.matmul %56, %55, %cst_8 {dimension_numbers = #tpu.dot_dimension_numbers<[1], [0], [0], [1], [0, 0, 1, 1], [], []>} : vector<8x72xf32>, vector<72x256xf32>, vector<8x256xf32> -> vector<8x256xf32>
    %c0_9 = arith.constant 0 : index
    %c0_10 = arith.constant 0 : index
    %58 = vector.load %arg5[%c0_9, %c0_10] : memref<8x1xf32, #tpu.memory_space<vmem>>, vector<8x1xf32>
    %59 = vector.broadcast %58 : vector<8x1xf32> to vector<8x256xf32>
    %60 = arith.addf %57, %59 : vector<8x256xf32>
    %61 = arith.addf %12, %60 : vector<8x256xf32>
    %c0_11 = arith.constant 0 : index
    %c0_12 = arith.constant 0 : index
    %c0_13 = arith.constant 0 : index
    %62 = vector.load %arg8[%c0_11, %c0_12, %c0_13] : memref<1x16x256xf32, #tpu.memory_space<vmem>>, vector<1x8x256xf32>
    %63 = vector.shape_cast %62 : vector<1x8x256xf32> to vector<8x256xf32>
    %64 = vector.shape_cast %61 : vector<8x256xf32> to vector<1x8x256xf32>
    tpu.vector_store %arg8[%c0_11, %c0_12, %c0_13], %64 {strides = array<i32>} : memref<1x16x256xf32, #tpu.memory_space<vmem>>, vector<1x8x256xf32>,
    %c17_i32_14 = arith.constant 17 : i32
    %65 = tpu.dynamic_rotate %61 by %c17_i32_14 dim 1 : vector<8x256xf32>, i32 -> vector<8x256xf32>
    %66 = vector.broadcast %23 : vector<1x256xf32> to vector<8x256xf32>
    %67 = arith.mulf %65, %66 : vector<8x256xf32>
    %c16_i32_15 = arith.constant 16 : i32
    %68 = tpu.dynamic_rotate %61 by %c16_i32_15 dim 1 : vector<8x256xf32>, i32 -> vector<8x256xf32>
    %69 = vector.broadcast %24 : vector<1x256xf32> to vector<8x256xf32>
    %70 = arith.mulf %68, %69 : vector<8x256xf32>
    %c15_i32_16 = arith.constant 15 : i32
    %71 = tpu.dynamic_rotate %61 by %c15_i32_16 dim 1 : vector<8x256xf32>, i32 -> vector<8x256xf32>
    %72 = vector.broadcast %25 : vector<1x256xf32> to vector<8x256xf32>
    %73 = arith.mulf %71, %72 : vector<8x256xf32>
    %c1_i32_17 = arith.constant 1 : i32
    %74 = tpu.dynamic_rotate %61 by %c1_i32_17 dim 1 : vector<8x256xf32>, i32 -> vector<8x256xf32>
    %75 = vector.broadcast %26 : vector<1x256xf32> to vector<8x256xf32>
    %76 = arith.mulf %74, %75 : vector<8x256xf32>
    %c255_i32_18 = arith.constant 255 : i32
    %77 = tpu.dynamic_rotate %61 by %c255_i32_18 dim 1 : vector<8x256xf32>, i32 -> vector<8x256xf32>
    %78 = vector.broadcast %27 : vector<1x256xf32> to vector<8x256xf32>
    %79 = arith.mulf %77, %78 : vector<8x256xf32>
    %c241_i32_19 = arith.constant 241 : i32
    %80 = tpu.dynamic_rotate %61 by %c241_i32_19 dim 1 : vector<8x256xf32>, i32 -> vector<8x256xf32>
    %81 = vector.broadcast %28 : vector<1x256xf32> to vector<8x256xf32>
    %82 = arith.mulf %80, %81 : vector<8x256xf32>
    %c240_i32_20 = arith.constant 240 : i32
    %83 = tpu.dynamic_rotate %61 by %c240_i32_20 dim 1 : vector<8x256xf32>, i32 -> vector<8x256xf32>
    %84 = vector.broadcast %29 : vector<1x256xf32> to vector<8x256xf32>
    %85 = arith.mulf %83, %84 : vector<8x256xf32>
    %c239_i32_21 = arith.constant 239 : i32
    %86 = tpu.dynamic_rotate %61 by %c239_i32_21 dim 1 : vector<8x256xf32>, i32 -> vector<8x256xf32>
    %87 = vector.broadcast %30 : vector<1x256xf32> to vector<8x256xf32>
    %88 = arith.mulf %86, %87 : vector<8x256xf32>
    %89 = tpu.concatenate %67, %70, %73, %76, %61, %79, %82, %85, %88 in 0 : vector<8x256xf32>, vector<8x256xf32>, vector<8x256xf32>, vector<8x256xf32>, vector<8x256xf32>, vector<8x256xf32>, vector<8x256xf32>, vector<8x256xf32>, vector<8x256xf32> -> vector<72x256xf32>
    %c0_22 = arith.constant 0 : index
    %c0_23 = arith.constant 0 : index
    %90 = vector.load %arg6[%c0_22, %c0_23] : memref<8x72xf32, #tpu.memory_space<vmem>>, vector<8x72xf32>
    %cst_24 = arith.constant dense<0.000000e+00> : vector<8x256xf32>
    %91 = tpu.matmul %90, %89, %cst_24 {dimension_numbers = #tpu.dot_dimension_numbers<[1], [0], [0], [1], [0, 0, 1, 1], [], []>} : vector<8x72xf32>, vector<72x256xf32>, vector<8x256xf32> -> vector<8x256xf32>
    %c0_25 = arith.constant 0 : index
    %c0_26 = arith.constant 0 : index
    %92 = vector.load %arg7[%c0_25, %c0_26] : memref<8x1xf32, #tpu.memory_space<vmem>>, vector<8x1xf32>
    %93 = vector.broadcast %92 : vector<8x1xf32> to vector<8x256xf32>
    %94 = arith.addf %91, %93 : vector<8x256xf32>
    %95 = arith.addf %21, %94 : vector<8x256xf32>
    %c0_27 = arith.constant 0 : index
    %c8 = arith.constant 8 : index
    %c0_28 = arith.constant 0 : index
    %96 = vector.load %arg8[%c0_27, %c8, %c0_28] : memref<1x16x256xf32, #tpu.memory_space<vmem>>, vector<1x8x256xf32>
    %97 = vector.shape_cast %96 : vector<1x8x256xf32> to vector<8x256xf32>
    %98 = vector.shape_cast %95 : vector<8x256xf32> to vector<1x8x256xf32>
    tpu.vector_store %arg8[%c0_27, %c8, %c0_28], %98 {strides = array<i32>} : memref<1x16x256xf32, #tpu.memory_space<vmem>>, vector<1x8x256xf32>,
    return
  }
  func.func @transform_0(%arg0: i32) -> (i32, i32, i32) {
    %c0_i32 = arith.constant 0 : i32
    %c0_i32_0 = arith.constant 0 : i32
    %c0_i32_1 = arith.constant 0 : i32
    return %arg0, %c0_i32, %c0_i32_0 : i32, i32, i32
  }
  func.func @transform_1(%arg0: i32) -> (i32, i32) {
    %c0_i32 = arith.constant 0 : i32
    %c0_i32_0 = arith.constant 0 : i32
    %c0_i32_1 = arith.constant 0 : i32
    return %c0_i32, %c0_i32_0 : i32, i32
  }
  func.func @transform_2(%arg0: i32) -> (i32, i32) {
    %c0_i32 = arith.constant 0 : i32
    %c0_i32_0 = arith.constant 0 : i32
    %c0_i32_1 = arith.constant 0 : i32
    return %c0_i32, %c0_i32_0 : i32, i32
  }
  func.func @transform_3(%arg0: i32) -> (i32, i32) {
    %c0_i32 = arith.constant 0 : i32
    %c0_i32_0 = arith.constant 0 : i32
    %c0_i32_1 = arith.constant 0 : i32
    return %c0_i32, %c0_i32_0 : i32, i32
  }
  func.func @transform_4(%arg0: i32) -> (i32, i32) {
    %c0_i32 = arith.constant 0 : i32
    %c0_i32_0 = arith.constant 0 : i32
    %c0_i32_1 = arith.constant 0 : i32
    return %c0_i32, %c0_i32_0 : i32, i32
  }
  func.func @transform_5(%arg0: i32) -> (i32, i32) {
    %c0_i32 = arith.constant 0 : i32
    %c0_i32_0 = arith.constant 0 : i32
    %c0_i32_1 = arith.constant 0 : i32
    return %c0_i32, %c0_i32_0 : i32, i32
  }
  func.func @transform_6(%arg0: i32) -> (i32, i32) {
    %c0_i32 = arith.constant 0 : i32
    %c0_i32_0 = arith.constant 0 : i32
    %c0_i32_1 = arith.constant 0 : i32
    return %c0_i32, %c0_i32_0 : i32, i32
  }
  func.func @transform_7(%arg0: i32) -> (i32, i32, i32) {
    %c0_i32 = arith.constant 0 : i32
    %c0_i32_0 = arith.constant 0 : i32
    %c0_i32_1 = arith.constant 0 : i32
    return %arg0, %c0_i32, %c0_i32_0 : i32, i32, i32
  }
}

</mosaic_0001>

<llo_original>
// kernel: _lambda_.1
$region0: #{_lambda_.1}
  #allocation0 [shape = 'u32[]', space=smem, size = 0x4, offset = 0x4, fixed_abs, tag = 'smem constant byte address 0x4 - core index']
  #allocation1 [shape = 'u32[144,128]{1,0:T(1,128)}', space=vmem, size = 0x12000, scoped, tag = 'internal scratch']
  %s0 = inlined_call_operand.vmem [shape: f32[2,4,256], index: 0, kind: input, shape index: {}]
  %s1 = inlined_call_operand.hbm [shape: f32[256,1024], index: 1, kind: input, shape index: {}]
  %s2 = inlined_call_operand.vmem [shape: f32[9,256], index: 2, kind: input, shape index: {}]
  %s3 = inlined_call_operand.vmem [shape: f32[8,72], index: 3, kind: input, shape index: {}]
  %s4 = inlined_call_operand.vmem [shape: f32[8,1], index: 4, kind: input, shape index: {}]
  %s5 = inlined_call_operand.vmem [shape: f32[8,72], index: 5, kind: input, shape index: {}]
  %s6 = inlined_call_operand.vmem [shape: f32[8,1], index: 6, kind: input, shape index: {}]
  %s7 = inlined_call_operand.vmem [shape: f32[2,16,256], index: 7, kind: output, shape index: {}]
  %s8 = sld [smem:[#allocation0]]
  $region65: #{_lambda_.1} parent=0
    _
  %s10 = ssub.s32 1, %s8
  %s11 = scalar_select 0, %s10, %s8
  $region1: #{_lambda_.1} parent=0
    #allocation2 [shape = 'u8[1048576]{0}', space=vmem, size = 0x100000, scoped, tag = 'input window, operand 1, single buffered']
    #allocation3 [shape = 's32[2]{0}', space=sflag, size = 0x8, scoped, tag = 'scoped memory for _lambda_.1']
    %12 = vsyncpa [#allocation3], 0
    loop: start=0, step=1, limit=4
    $region2: #{_lambda_.1} parent=1 // loop_pre_header
      _
    $region3: #{_lambda_.1} parent=1 // loop_header
      %s14 = sphi 0, %s18
      %p15 = scmp.ge.s32.totalorder %s14, 4
      %s24 = sphi 0, %s26
      %s27 = sphi 0, %s24
      %s28 = sphi 0, %s27
      %s44 = sphi 0, %s28
      %s48 = sphi 0, %s48
      %s50 = sphi 0, %s48
      %s51 = sphi 0, %s50
      %s65 = sphi 0, %s51
      %s69 = sphi 0, %s69
      %s71 = sphi 0, %s69
      %s72 = sphi 0, %s71
      %s86 = sphi 0, %s72
      %s90 = sphi 0, %s90
      %s92 = sphi 0, %s90
      %s93 = sphi 0, %s92
      %s107 = sphi 0, %s93
      %s111 = sphi 0, %s111
      %s113 = sphi 0, %s111
      %s114 = sphi 0, %s113
      %s128 = sphi 0, %s114
      %s132 = sphi 0, %s132
      %s134 = sphi 0, %s132
      %s135 = sphi 0, %s134
      %s149 = sphi 0, %s135
      %s153 = sphi 0, %s153
      %s155 = sphi 0, %s153
      %s156 = sphi 0, %s155
      %s170 = sphi 0, %s156
      %s176 = sphi 0, %s178
      %s179 = sphi 0, %s176
      %s180 = sphi 0, %s179
      %s196 = sphi 0, %s180
    $region4: #{_lambda_.1} parent=1 // loop_header_branch
      %17 = sbr.rel (%p15) target = $region8
    $region5: #{_lambda_.1} parent=1 // loop_body
      %s19 = ssub.s32 %s14, 1
      %s20 = ssub.s32 %s14, 2
      %s21 = sadd.s32 %s14, 1
      %s22 = ssub.s32 %s14, %s21
      %p23 = scmp.eq.s32.totalorder %s22, 0
      %s25 = sadd.s32 %s24, 1
      %s26 = scalar_select %p23, %s24, %s25
      %p29 = pneg %p23
      %p30 = scmp.eq.s32.totalorder %s14, 1
      %p31 = por %p29, %p30
      %p32 = scmp.ne.s32.totalorder %s24, %s27
      %p33 = scmp.eq.s32.totalorder %s14, 0
      %p34 = por %p32, %p33
      %p35 = scmp.ne.s32.totalorder %s24, %s27
      %p36 = scmp.eq.s32.totalorder %s19, 1
      %p37 = por %p35, %p36
      %p38 = scmp.ne.s32.totalorder %s27, %s28
      %p39 = scmp.eq.s32.totalorder %s19, 0
      %p40 = por %p38, %p39
      %p41 = scmp.ne.s32.totalorder %s27, %s28
      %p42 = scmp.eq.s32.totalorder %s20, 1
      %p43 = por %p41, %p42
      %p45 = scmp.ne.s32.totalorder %s28, %s44
      %p46 = scmp.eq.s32.totalorder %s20, 0
      %p47 = por %p45, %p46
      %s49 = sadd.s32 %s48, 1
      %p52 = scmp.eq.s32.totalorder %s14, 1
      %p53 = scmp.ne.s32.totalorder %s48, %s50
      %p54 = scmp.eq.s32.totalorder %s14, 0
      %p55 = por %p53, %p54
      %p56 = scmp.ne.s32.totalorder %s48, %s50
      %p57 = scmp.eq.s32.totalorder %s19, 1
      %p58 = por %p56, %p57
      %p59 = scmp.ne.s32.totalorder %s50, %s51
      %p60 = scmp.eq.s32.totalorder %s19, 0
      %p61 = por %p59, %p60
      %p62 = scmp.ne.s32.totalorder %s50, %s51
      %p63 = scmp.eq.s32.totalorder %s20, 1
      %p64 = por %p62, %p63
      %p66 = scmp.ne.s32.totalorder %s51, %s65
      %p67 = scmp.eq.s32.totalorder %s20, 0
      %p68 = por %p66, %p67
      %s70 = sadd.s32 %s69, 1
      %p73 = scmp.eq.s32.totalorder %s14, 1
      %p74 = scmp.ne.s32.totalorder %s69, %s71
      %p75 = scmp.eq.s32.totalorder %s14, 0
      %p76 = por %p74, %p75
      %p77 = scmp.ne.s32.totalorder %s69, %s71
      %p78 = scmp.eq.s32.totalorder %s19, 1
      %p79 = por %p77, %p78
      %p80 = scmp.ne.s32.totalorder %s71, %s72
      %p81 = scmp.eq.s32.totalorder %s19, 0
      %p82 = por %p80, %p81
      %p83 = scmp.ne.s32.totalorder %s71, %s72
      %p84 = scmp.eq.s32.totalorder %s20, 1
      %p85 = por %p83, %p84
      %p87 = scmp.ne.s32.totalorder %s72, %s86
      %p88 = scmp.eq.s32.totalorder %s20, 0
      %p89 = por %p87, %p88
      %s91 = sadd.s32 %s90, 1
      %p94 = scmp.eq.s32.totalorder %s14, 1
      %p95 = scmp.ne.s32.totalorder %s90, %s92
      %p96 = scmp.eq.s32.totalorder %s14, 0
      %p97 = por %p95, %p96
      %p98 = scmp.ne.s32.totalorder %s90, %s92
      %p99 = scmp.eq.s32.totalorder %s19, 1
      %p100 = por %p98, %p99
      %p101 = scmp.ne.s32.totalorder %s92, %s93
      %p102 = scmp.eq.s32.totalorder %s19, 0
      %p103 = por %p101, %p102
      %p104 = scmp.ne.s32.totalorder %s92, %s93
      %p105 = scmp.eq.s32.totalorder %s20, 1
      %p106 = por %p104, %p105
      %p108 = scmp.ne.s32.totalorder %s93, %s107
      %p109 = scmp.eq.s32.totalorder %s20, 0
      %p110 = por %p108, %p109
      %s112 = sadd.s32 %s111, 1
      %p115 = scmp.eq.s32.totalorder %s14, 1
      %p116 = scmp.ne.s32.totalorder %s111, %s113
      %p117 = scmp.eq.s32.totalorder %s14, 0
      %p118 = por %p116, %p117
      %p119 = scmp.ne.s32.totalorder %s111, %s113
      %p120 = scmp.eq.s32.totalorder %s19, 1
      %p121 = por %p119, %p120
      %p122 = scmp.ne.s32.totalorder %s113, %s114
      %p123 = scmp.eq.s32.totalorder %s19, 0
      %p124 = por %p122, %p123
      %p125 = scmp.ne.s32.totalorder %s113, %s114
      %p126 = scmp.eq.s32.totalorder %s20, 1
      %p127 = por %p125, %p126
      %p129 = scmp.ne.s32.totalorder %s114, %s128
      %p130 = scmp.eq.s32.totalorder %s20, 0
      %p131 = por %p129, %p130
      %s133 = sadd.s32 %s132, 1
      %p136 = scmp.eq.s32.totalorder %s14, 1
      %p137 = scmp.ne.s32.totalorder %s132, %s134
      %p138 = scmp.eq.s32.totalorder %s14, 0
      %p139 = por %p137, %p138
      %p140 = scmp.ne.s32.totalorder %s132, %s134
      %p141 = scmp.eq.s32.totalorder %s19, 1
      %p142 = por %p140, %p141
      %p143 = scmp.ne.s32.totalorder %s134, %s135
      %p144 = scmp.eq.s32.totalorder %s19, 0
      %p145 = por %p143, %p144
      %p146 = scmp.ne.s32.totalorder %s134, %s135
      %p147 = scmp.eq.s32.totalorder %s20, 1
      %p148 = por %p146, %p147
      %p150 = scmp.ne.s32.totalorder %s135, %s149
      %p151 = scmp.eq.s32.totalorder %s20, 0
      %p152 = por %p150, %p151
      %s154 = sadd.s32 %s153, 1
      %p157 = scmp.eq.s32.totalorder %s14, 1
      %p158 = scmp.ne.s32.totalorder %s153, %s155
      %p159 = scmp.eq.s32.totalorder %s14, 0
      %p160 = por %p158, %p159
      %p161 = scmp.ne.s32.totalorder %s153, %s155
      %p162 = scmp.eq.s32.totalorder %s19, 1
      %p163 = por %p161, %p162
      %p164 = scmp.ne.s32.totalorder %s155, %s156
      %p165 = scmp.eq.s32.totalorder %s19, 0
      %p166 = por %p164, %p165
      %p167 = scmp.ne.s32.totalorder %s155, %s156
      %p168 = scmp.eq.s32.totalorder %s20, 1
      %p169 = por %p167, %p168
      %p171 = scmp.ne.s32.totalorder %s156, %s170
      %p172 = scmp.eq.s32.totalorder %s20, 0
      %p173 = por %p171, %p172
      %s174 = ssub.s32 %s14, %s21
      %p175 = scmp.eq.s32.totalorder %s174, 0
      %s177 = sadd.s32 %s176, 1
      %s178 = scalar_select %p175, %s176, %s177
      %p181 = pneg %p175
      %p182 = scmp.eq.s32.totalorder %s14, 1
      %p183 = por %p181, %p182
      %p184 = scmp.ne.s32.totalorder %s176, %s179
      %p185 = scmp.eq.s32.totalorder %s14, 0
      %p186 = por %p184, %p185
      %p187 = scmp.ne.s32.totalorder %s176, %s179
      %p188 = scmp.eq.s32.totalorder %s19, 1
      %p189 = por %p187, %p188
      %p190 = scmp.ne.s32.totalorder %s179, %s180
      %p191 = scmp.eq.s32.totalorder %s19, 0
      %p192 = por %p190, %p191
      %p193 = scmp.ne.s32.totalorder %s179, %s180
      %p194 = scmp.eq.s32.totalorder %s20, 1
      %p195 = por %p193, %p194
      %p197 = scmp.ne.s32.totalorder %s180, %s196
      %p198 = scmp.eq.s32.totalorder %s20, 0
      %p199 = por %p197, %p198
      %p200 = scmp.le.s32.totalorder 1, %s14
      %p201 = scmp.lt.s32.totalorder %s14, 3
      %p202 = pnand %p200, %p201
      %p203 = pneg %p202
      // Predicated region
      $region9: #{_lambda_.1} parent=5 // pred_check
        _
      $region10: #{_lambda_.1} parent=5 // pred_check_branch
        %205 = sbr.rel (%p202) target = $region12
      $region11: #{_lambda_.1} parent=5 // pred_region
        %s206 = ssub.s32 %s14, 1
        // Predicated region
        $region13: #{_lambda_.1} parent=11 // pred_check
          %p207 = pneg %p61
        $region14: #{_lambda_.1} parent=11 // pred_check_branch
          %209 = sbr.rel (%p207) target = $region16
        $region15: #{_lambda_.1} parent=11 // pred_region
          %s211 = ssub.s32 32768, 32768
          %212 = vsyncadd [#allocation3], %s211
          %s213 = sshll.u32 [#allocation2], 4
          %s214 = int_to_ptr.vmem [resolvable:$true] %s213
          %219 = dma.hbm_to_vmem [thread:$0]  %s1, 32768, %s214, [#allocation3], 1024, 1024, 64
        $region16: #{_lambda_.1} parent=11 // pred_fallthru
          _
        // Predicated region
        $region17: #{_lambda_.1} parent=11 // pred_check
          %p220 = pneg %p82
        $region18: #{_lambda_.1} parent=11 // pred_check_branch
          %222 = sbr.rel (%p220) target = $region20
        $region19: #{_lambda_.1} parent=11 // pred_region
          _
        $region20: #{_lambda_.1} parent=11 // pred_fallthru
          _
        // Predicated region
        $region21: #{_lambda_.1} parent=11 // pred_check
          %p223 = pneg %p103
        $region22: #{_lambda_.1} parent=11 // pred_check_branch
          %225 = sbr.rel (%p223) target = $region24
        $region23: #{_lambda_.1} parent=11 // pred_region
          _
        $region24: #{_lambda_.1} parent=11 // pred_fallthru
          _
        // Predicated region
        $region25: #{_lambda_.1} parent=11 // pred_check
          %p226 = pneg %p124
        $region26: #{_lambda_.1} parent=11 // pred_check_branch
          %228 = sbr.rel (%p226) target = $region28
        $region27: #{_lambda_.1} parent=11 // pred_region
          _
        $region28: #{_lambda_.1} parent=11 // pred_fallthru
          _
        // Predicated region
        $region29: #{_lambda_.1} parent=11 // pred_check
          %p229 = pneg %p145
        $region30: #{_lambda_.1} parent=11 // pred_check_branch
          %231 = sbr.rel (%p229) target = $region32
        $region31: #{_lambda_.1} parent=11 // pred_region
          _
        $region32: #{_lambda_.1} parent=11 // pred_fallthru
          _
        // Predicated region
        $region33: #{_lambda_.1} parent=11 // pred_check
          %p232 = pneg %p166
        $region34: #{_lambda_.1} parent=11 // pred_check_branch
          %234 = sbr.rel (%p232) target = $region36
        $region35: #{_lambda_.1} parent=11 // pred_region
          _
        $region36: #{_lambda_.1} parent=11 // pred_fallthru
          _
      $region12: #{_lambda_.1} parent=5 // pred_fallthru
        _
      %p235 = scmp.lt.s32.totalorder %s14, 2
      // Predicated region
      $region37: #{_lambda_.1} parent=5 // pred_check
        %p236 = pneg %p235
      $region38: #{_lambda_.1} parent=5 // pred_check_branch
        %238 = sbr.rel (%p236) target = $region40
      $region39: #{_lambda_.1} parent=5 // pred_region
        // Predicated region
        $region41: #{_lambda_.1} parent=39 // pred_check
          %p239 = pneg %p34
        $region42: #{_lambda_.1} parent=39 // pred_check_branch
          %241 = sbr.rel (%p239) target = $region44
        $region43: #{_lambda_.1} parent=39 // pred_region
          %p242 = scmp.lt.s32.totalorder %s14, 1
          %s243 = scalar_select %p242, %s14, 1
          %s244 = smul.addr %s243, 2
          %s245 = smul.addr %s244, 4
          %s246 = scalar_lea.vmem %s0, %s245
        $region44: #{_lambda_.1} parent=39 // pred_fallthru
          _
      $region40: #{_lambda_.1} parent=5 // pred_fallthru
        _
      %p247 = scmp.le.s32.totalorder 1, %s14
      %p248 = scmp.lt.s32.totalorder %s14, 3
      %p249 = pnand %p247, %p248
      %p250 = pneg %p249
      // Predicated region
      $region45: #{_lambda_.1} parent=5 // pred_check
        _
      $region46: #{_lambda_.1} parent=5 // pred_check_branch
        %252 = sbr.rel (%p249) target = $region48
      $region47: #{_lambda_.1} parent=5 // pred_region
        %s253 = ssub.s32 %s14, 1
        // Predicated region
        $region49: #{_lambda_.1} parent=47 // pred_check
          %p254 = pneg %p61
        $region50: #{_lambda_.1} parent=47 // pred_check_branch
          %256 = sbr.rel (%p254) target = $region52
        $region51: #{_lambda_.1} parent=47 // pred_region
          %257 = dma.done [#allocation3], 32768
        $region52: #{_lambda_.1} parent=47 // pred_fallthru
          _
        %p258 = scmp.lt.s32.totalorder %s19, 1
        %s259 = scalar_select %p258, %s19, 1
        %s260 = smul.addr %s259, 2
        %s261 = smul.addr %s260, 4
        %s262 = scalar_lea.vmem %s0, %s261
        %p263 = pneg %p40
        %p264 = pneg %p37
        %p265 = pneg %p61
        %p266 = pneg %p58
        %p267 = pneg %p82
        %p268 = pneg %p79
        %p269 = pneg %p103
        %p270 = pneg %p100
        %p271 = pneg %p124
        %p272 = pneg %p121
        %p273 = pneg %p145
        %p274 = pneg %p142
        %p275 = pneg %p166
        %p276 = pneg %p163
        %p277 = pneg %p192
        %p278 = pneg %p189
        %p279 = scmp.lt.s32.totalorder %s19, 1
        %s280 = scalar_select %p279, %s19, 1
        %s281 = smul.addr %s280, 4
        %s282 = smul.addr %s281, 8
        %s283 = scalar_lea.vmem %s7, %s282
        %p284 = scmp.lt.s32.totalorder %s19, 1
        %s285 = scalar_select %p284, %s19, 1
        %s286 = smul.addr %s285, 2
        %s287 = smul.addr %s286, 4
        %s288 = scalar_lea.vmem %s0, %s287
        %p289 = scmp.lt.s32.totalorder %s19, 1
        %s290 = scalar_select %p289, %s19, 1
        %s291 = smul.addr %s290, 4
        %s292 = smul.addr %s291, 8
        %s293 = scalar_lea.vmem %s7, %s292
        %v294 = vld [vmem:[%s288] sm:$0xff]
        %v295 = vld [vmem:[#allocation2] sm:$0xff]
        %v296 = vld [vmem:[#allocation2 + $0x8] sm:$0xff]
        %v297 = vld [vmem:[#allocation2 + $0x10] sm:$0xff]
        %v298 = vld [vmem:[#allocation2 + $0x18] sm:$0xff]
        %v299 = vld [vmem:[#allocation2 + $0x20] sm:$0xff]
        %v300 = vld [vmem:[#allocation2 + $0x28] sm:$0xff]
        %v301 = vld [vmem:[#allocation2 + $0x30] sm:$0xff]
        %v302 = vld [vmem:[#allocation2 + $0x38] sm:$0xff]
        %v303 = vld [vmem:[#allocation2 + $0x40] sm:$0xff]
        %v304 = vld [vmem:[#allocation2 + $0x48] sm:$0xff]
        %v305 = vld [vmem:[#allocation2 + $0x50] sm:$0xff]
        %v306 = vld [vmem:[#allocation2 + $0x58] sm:$0xff]
        %v307 = vld [vmem:[#allocation2 + $0x60] sm:$0xff]
        %v308 = vld [vmem:[#allocation2 + $0x68] sm:$0xff]
        %v309 = vld [vmem:[#allocation2 + $0x70] sm:$0xff]
        %v310 = vld [vmem:[#allocation2 + $0x78] sm:$0xff]
        %v311 = vld [vmem:[#allocation2 + $0x80] sm:$0xff]
        %v312 = vld [vmem:[#allocation2 + $0x88] sm:$0xff]
        %v313 = vld [vmem:[#allocation2 + $0x90] sm:$0xff]
        %v314 = vld [vmem:[#allocation2 + $0x98] sm:$0xff]
        %v315 = vld [vmem:[#allocation2 + $0xa0] sm:$0xff]
        %v316 = vld [vmem:[#allocation2 + $0xa8] sm:$0xff]
        %v317 = vld [vmem:[#allocation2 + $0xb0] sm:$0xff]
        %v318 = vld [vmem:[#allocation2 + $0xb8] sm:$0xff]
        %v319 = vld [vmem:[#allocation2 + $0xc0] sm:$0xff]
        %v320 = vld [vmem:[#allocation2 + $0xc8] sm:$0xff]
        %v321 = vld [vmem:[#allocation2 + $0xd0] sm:$0xff]
        %v322 = vld [vmem:[#allocation2 + $0xd8] sm:$0xff]
        %v323 = vld [vmem:[#allocation2 + $0xe0] sm:$0xff]
        %v324 = vld [vmem:[#allocation2 + $0xe8] sm:$0xff]
        %v325 = vld [vmem:[#allocation2 + $0xf0] sm:$0xff]
        %v326 = vld [vmem:[#allocation2 + $0xf8] sm:$0xff]
        %v327 = vld [vmem:[#allocation2 + $0x100] sm:$0xff]
        %v328 = vld [vmem:[#allocation2 + $0x108] sm:$0xff]
        %v329 = vld [vmem:[#allocation2 + $0x110] sm:$0xff]
        %v330 = vld [vmem:[#allocation2 + $0x118] sm:$0xff]
        %v331 = vld [vmem:[#allocation2 + $0x120] sm:$0xff]
        %v332 = vld [vmem:[#allocation2 + $0x128] sm:$0xff]
        %v333 = vld [vmem:[#allocation2 + $0x130] sm:$0xff]
        %v334 = vld [vmem:[#allocation2 + $0x138] sm:$0xff]
        %v335 = vld [vmem:[#allocation2 + $0x140] sm:$0xff]
        %v336 = vld [vmem:[#allocation2 + $0x148] sm:$0xff]
        %v337 = vld [vmem:[#allocation2 + $0x150] sm:$0xff]
        %v338 = vld [vmem:[#allocation2 + $0x158] sm:$0xff]
        %v339 = vld [vmem:[#allocation2 + $0x160] sm:$0xff]
        %v340 = vld [vmem:[#allocation2 + $0x168] sm:$0xff]
        %v341 = vld [vmem:[#allocation2 + $0x170] sm:$0xff]
        %v342 = vld [vmem:[#allocation2 + $0x178] sm:$0xff]
        %v343 = vld [vmem:[#allocation2 + $0x180] sm:$0xff]
        %v344 = vld [vmem:[#allocation2 + $0x188] sm:$0xff]
        %v345 = vld [vmem:[#allocation2 + $0x190] sm:$0xff]
        %v346 = vld [vmem:[#allocation2 + $0x198] sm:$0xff]
        %v347 = vld [vmem:[#allocation2 + $0x1a0] sm:$0xff]
        %v348 = vld [vmem:[#allocation2 + $0x1a8] sm:$0xff]
        %v349 = vld [vmem:[#allocation2 + $0x1b0] sm:$0xff]
        %v350 = vld [vmem:[#allocation2 + $0x1b8] sm:$0xff]
        %v351 = vld [vmem:[#allocation2 + $0x1c0] sm:$0xff]
        %v352 = vld [vmem:[#allocation2 + $0x1c8] sm:$0xff]
        %v353 = vld [vmem:[#allocation2 + $0x1d0] sm:$0xff]
        %v354 = vld [vmem:[#allocation2 + $0x1d8] sm:$0xff]
        %v355 = vld [vmem:[#allocation2 + $0x1e0] sm:$0xff]
        %v356 = vld [vmem:[#allocation2 + $0x1e8] sm:$0xff]
        %v357 = vld [vmem:[#allocation2 + $0x1f0] sm:$0xff]
        %v358 = vld [vmem:[#allocation2 + $0x1f8] sm:$0xff]
        %v359 = vld [vmem:[#allocation2 + $0x200] sm:$0xff]
        %v360 = vld [vmem:[#allocation2 + $0x208] sm:$0xff]
        %v361 = vld [vmem:[#allocation2 + $0x210] sm:$0xff]
        %v362 = vld [vmem:[#allocation2 + $0x218] sm:$0xff]
        %v363 = vld [vmem:[#allocation2 + $0x220] sm:$0xff]
        %v364 = vld [vmem:[#allocation2 + $0x228] sm:$0xff]
        %v365 = vld [vmem:[#allocation2 + $0x230] sm:$0xff]
        %v366 = vld [vmem:[#allocation2 + $0x238] sm:$0xff]
        %v367 = vld [vmem:[#allocation2 + $0x240] sm:$0xff]
        %v368 = vld [vmem:[#allocation2 + $0x248] sm:$0xff]
        %v369 = vld [vmem:[#allocation2 + $0x250] sm:$0xff]
        %v370 = vld [vmem:[#allocation2 + $0x258] sm:$0xff]
        %v371 = vld [vmem:[#allocation2 + $0x260] sm:$0xff]
        %v372 = vld [vmem:[#allocation2 + $0x268] sm:$0xff]
        %v373 = vld [vmem:[#allocation2 + $0x270] sm:$0xff]
        %v374 = vld [vmem:[#allocation2 + $0x278] sm:$0xff]
        %v375 = vld [vmem:[#allocation2 + $0x280] sm:$0xff]
        %v376 = vld [vmem:[#allocation2 + $0x288] sm:$0xff]
        %v377 = vld [vmem:[#allocation2 + $0x290] sm:$0xff]
        %v378 = vld [vmem:[#allocation2 + $0x298] sm:$0xff]
        %v379 = vld [vmem:[#allocation2 + $0x2a0] sm:$0xff]
        %v380 = vld [vmem:[#allocation2 + $0x2a8] sm:$0xff]
        %v381 = vld [vmem:[#allocation2 + $0x2b0] sm:$0xff]
        %v382 = vld [vmem:[#allocation2 + $0x2b8] sm:$0xff]
        %v383 = vld [vmem:[#allocation2 + $0x2c0] sm:$0xff]
        %v384 = vld [vmem:[#allocation2 + $0x2c8] sm:$0xff]
        %v385 = vld [vmem:[#allocation2 + $0x2d0] sm:$0xff]
        %v386 = vld [vmem:[#allocation2 + $0x2d8] sm:$0xff]
        %v387 = vld [vmem:[#allocation2 + $0x2e0] sm:$0xff]
        %v388 = vld [vmem:[#allocation2 + $0x2e8] sm:$0xff]
        %v389 = vld [vmem:[#allocation2 + $0x2f0] sm:$0xff]
        %v390 = vld [vmem:[#allocation2 + $0x2f8] sm:$0xff]
        %v391 = vld [vmem:[#allocation2 + $0x300] sm:$0xff]
        %v392 = vld [vmem:[#allocation2 + $0x308] sm:$0xff]
        %v393 = vld [vmem:[#allocation2 + $0x310] sm:$0xff]
        %v394 = vld [vmem:[#allocation2 + $0x318] sm:$0xff]
        %v395 = vld [vmem:[#allocation2 + $0x320] sm:$0xff]
        %v396 = vld [vmem:[#allocation2 + $0x328] sm:$0xff]
        %v397 = vld [vmem:[#allocation2 + $0x330] sm:$0xff]
        %v398 = vld [vmem:[#allocation2 + $0x338] sm:$0xff]
        %v399 = vld [vmem:[#allocation2 + $0x340] sm:$0xff]
        %v400 = vld [vmem:[#allocation2 + $0x348] sm:$0xff]
        %v401 = vld [vmem:[#allocation2 + $0x350] sm:$0xff]
        %v402 = vld [vmem:[#allocation2 + $0x358] sm:$0xff]
        %v403 = vld [vmem:[#allocation2 + $0x360] sm:$0xff]
        %v404 = vld [vmem:[#allocation2 + $0x368] sm:$0xff]
        %v405 = vld [vmem:[#allocation2 + $0x370] sm:$0xff]
        %v406 = vld [vmem:[#allocation2 + $0x378] sm:$0xff]
        %v407 = vld [vmem:[#allocation2 + $0x380] sm:$0xff]
        %v408 = vld [vmem:[#allocation2 + $0x388] sm:$0xff]
        %v409 = vld [vmem:[#allocation2 + $0x390] sm:$0xff]
        %v410 = vld [vmem:[#allocation2 + $0x398] sm:$0xff]
        %v411 = vld [vmem:[#allocation2 + $0x3a0] sm:$0xff]
        %v412 = vld [vmem:[#allocation2 + $0x3a8] sm:$0xff]
        %v413 = vld [vmem:[#allocation2 + $0x3b0] sm:$0xff]
        %v414 = vld [vmem:[#allocation2 + $0x3b8] sm:$0xff]
        %v415 = vld [vmem:[#allocation2 + $0x3c0] sm:$0xff]
        %v416 = vld [vmem:[#allocation2 + $0x3c8] sm:$0xff]
        %v417 = vld [vmem:[#allocation2 + $0x3d0] sm:$0xff]
        %v418 = vld [vmem:[#allocation2 + $0x3d8] sm:$0xff]
        %v419 = vld [vmem:[#allocation2 + $0x3e0] sm:$0xff]
        %v420 = vld [vmem:[#allocation2 + $0x3e8] sm:$0xff]
        %v421 = vld [vmem:[#allocation2 + $0x3f0] sm:$0xff]
        %v422 = vld [vmem:[#allocation2 + $0x3f8] sm:$0xff]
        %v423 = vld [vmem:[#allocation2 + $0x400] sm:$0xff]
        %v424 = vld [vmem:[#allocation2 + $0x408] sm:$0xff]
        %v425 = vld [vmem:[#allocation2 + $0x410] sm:$0xff]
        %v426 = vld [vmem:[#allocation2 + $0x418] sm:$0xff]
        %v427 = vld [vmem:[#allocation2 + $0x420] sm:$0xff]
        %v428 = vld [vmem:[#allocation2 + $0x428] sm:$0xff]
        %v429 = vld [vmem:[#allocation2 + $0x430] sm:$0xff]
        %v430 = vld [vmem:[#allocation2 + $0x438] sm:$0xff]
        %v431 = vld [vmem:[#allocation2 + $0x440] sm:$0xff]
        %v432 = vld [vmem:[#allocation2 + $0x448] sm:$0xff]
        %v433 = vld [vmem:[#allocation2 + $0x450] sm:$0xff]
        %v434 = vld [vmem:[#allocation2 + $0x458] sm:$0xff]
        %v435 = vld [vmem:[#allocation2 + $0x460] sm:$0xff]
        %v436 = vld [vmem:[#allocation2 + $0x468] sm:$0xff]
        %v437 = vld [vmem:[#allocation2 + $0x470] sm:$0xff]
        %v438 = vld [vmem:[#allocation2 + $0x478] sm:$0xff]
        %v439 = vld [vmem:[#allocation2 + $0x480] sm:$0xff]
        %v440 = vld [vmem:[#allocation2 + $0x488] sm:$0xff]
        %v441 = vld [vmem:[#allocation2 + $0x490] sm:$0xff]
        %v442 = vld [vmem:[#allocation2 + $0x498] sm:$0xff]
        %v443 = vld [vmem:[#allocation2 + $0x4a0] sm:$0xff]
        %v444 = vld [vmem:[#allocation2 + $0x4a8] sm:$0xff]
        %v445 = vld [vmem:[#allocation2 + $0x4b0] sm:$0xff]
        %v446 = vld [vmem:[#allocation2 + $0x4b8] sm:$0xff]
        %v447 = vld [vmem:[#allocation2 + $0x4c0] sm:$0xff]
        %v448 = vld [vmem:[#allocation2 + $0x4c8] sm:$0xff]
        %v449 = vld [vmem:[#allocation2 + $0x4d0] sm:$0xff]
        %v450 = vld [vmem:[#allocation2 + $0x4d8] sm:$0xff]
        %v451 = vld [vmem:[#allocation2 + $0x4e0] sm:$0xff]
        %v452 = vld [vmem:[#allocation2 + $0x4e8] sm:$0xff]
        %v453 = vld [vmem:[#allocation2 + $0x4f0] sm:$0xff]
        %v454 = vld [vmem:[#allocation2 + $0x4f8] sm:$0xff]
        %v455 = vld [vmem:[#allocation2 + $0x500] sm:$0xff]
        %v456 = vld [vmem:[#allocation2 + $0x508] sm:$0xff]
        %v457 = vld [vmem:[#allocation2 + $0x510] sm:$0xff]
        %v458 = vld [vmem:[#allocation2 + $0x518] sm:$0xff]
        %v459 = vld [vmem:[#allocation2 + $0x520] sm:$0xff]
        %v460 = vld [vmem:[#allocation2 + $0x528] sm:$0xff]
        %v461 = vld [vmem:[#allocation2 + $0x530] sm:$0xff]
        %v462 = vld [vmem:[#allocation2 + $0x538] sm:$0xff]
        %v463 = vld [vmem:[#allocation2 + $0x540] sm:$0xff]
        %v464 = vld [vmem:[#allocation2 + $0x548] sm:$0xff]
        %v465 = vld [vmem:[#allocation2 + $0x550] sm:$0xff]
        %v466 = vld [vmem:[#allocation2 + $0x558] sm:$0xff]
        %v467 = vld [vmem:[#allocation2 + $0x560] sm:$0xff]
        %v468 = vld [vmem:[#allocation2 + $0x568] sm:$0xff]
        %v469 = vld [vmem:[#allocation2 + $0x570] sm:$0xff]
        %v470 = vld [vmem:[#allocation2 + $0x578] sm:$0xff]
        %v471 = vld [vmem:[#allocation2 + $0x580] sm:$0xff]
        %v472 = vld [vmem:[#allocation2 + $0x588] sm:$0xff]
        %v473 = vld [vmem:[#allocation2 + $0x590] sm:$0xff]
        %v474 = vld [vmem:[#allocation2 + $0x598] sm:$0xff]
        %v475 = vld [vmem:[#allocation2 + $0x5a0] sm:$0xff]
        %v476 = vld [vmem:[#allocation2 + $0x5a8] sm:$0xff]
        %v477 = vld [vmem:[#allocation2 + $0x5b0] sm:$0xff]
        %v478 = vld [vmem:[#allocation2 + $0x5b8] sm:$0xff]
        %v479 = vld [vmem:[#allocation2 + $0x5c0] sm:$0xff]
        %v480 = vld [vmem:[#allocation2 + $0x5c8] sm:$0xff]
        %v481 = vld [vmem:[#allocation2 + $0x5d0] sm:$0xff]
        %v482 = vld [vmem:[#allocation2 + $0x5d8] sm:$0xff]
        %v483 = vld [vmem:[#allocation2 + $0x5e0] sm:$0xff]
        %v484 = vld [vmem:[#allocation2 + $0x5e8] sm:$0xff]
        %v485 = vld [vmem:[#allocation2 + $0x5f0] sm:$0xff]
        %v486 = vld [vmem:[#allocation2 + $0x5f8] sm:$0xff]
        %v487 = vld [vmem:[#allocation2 + $0x600] sm:$0xff]
        %v488 = vld [vmem:[#allocation2 + $0x608] sm:$0xff]
        %v489 = vld [vmem:[#allocation2 + $0x610] sm:$0xff]
        %v490 = vld [vmem:[#allocation2 + $0x618] sm:$0xff]
        %v491 = vld [vmem:[#allocation2 + $0x620] sm:$0xff]
        %v492 = vld [vmem:[#allocation2 + $0x628] sm:$0xff]
        %v493 = vld [vmem:[#allocation2 + $0x630] sm:$0xff]
        %v494 = vld [vmem:[#allocation2 + $0x638] sm:$0xff]
        %v495 = vld [vmem:[#allocation2 + $0x640] sm:$0xff]
        %v496 = vld [vmem:[#allocation2 + $0x648] sm:$0xff]
        %v497 = vld [vmem:[#allocation2 + $0x650] sm:$0xff]
        %v498 = vld [vmem:[#allocation2 + $0x658] sm:$0xff]
        %v499 = vld [vmem:[#allocation2 + $0x660] sm:$0xff]
        %v500 = vld [vmem:[#allocation2 + $0x668] sm:$0xff]
        %v501 = vld [vmem:[#allocation2 + $0x670] sm:$0xff]
        %v502 = vld [vmem:[#allocation2 + $0x678] sm:$0xff]
        %v503 = vld [vmem:[#allocation2 + $0x680] sm:$0xff]
        %v504 = vld [vmem:[#allocation2 + $0x688] sm:$0xff]
        %v505 = vld [vmem:[#allocation2 + $0x690] sm:$0xff]
        %v506 = vld [vmem:[#allocation2 + $0x698] sm:$0xff]
        %v507 = vld [vmem:[#allocation2 + $0x6a0] sm:$0xff]
        %v508 = vld [vmem:[#allocation2 + $0x6a8] sm:$0xff]
        %v509 = vld [vmem:[#allocation2 + $0x6b0] sm:$0xff]
        %v510 = vld [vmem:[#allocation2 + $0x6b8] sm:$0xff]
        %v511 = vld [vmem:[#allocation2 + $0x6c0] sm:$0xff]
        %v512 = vld [vmem:[#allocation2 + $0x6c8] sm:$0xff]
        %v513 = vld [vmem:[#allocation2 + $0x6d0] sm:$0xff]
        %v514 = vld [vmem:[#allocation2 + $0x6d8] sm:$0xff]
        %v515 = vld [vmem:[#allocation2 + $0x6e0] sm:$0xff]
        %v516 = vld [vmem:[#allocation2 + $0x6e8] sm:$0xff]
        %v517 = vld [vmem:[#allocation2 + $0x6f0] sm:$0xff]
        %v518 = vld [vmem:[#allocation2 + $0x6f8] sm:$0xff]
        %v519 = vld [vmem:[#allocation2 + $0x700] sm:$0xff]
        %v520 = vld [vmem:[#allocation2 + $0x708] sm:$0xff]
        %v521 = vld [vmem:[#allocation2 + $0x710] sm:$0xff]
        %v522 = vld [vmem:[#allocation2 + $0x718] sm:$0xff]
        %v523 = vld [vmem:[#allocation2 + $0x720] sm:$0xff]
        %v524 = vld [vmem:[#allocation2 + $0x728] sm:$0xff]
        %v525 = vld [vmem:[#allocation2 + $0x730] sm:$0xff]
        %v526 = vld [vmem:[#allocation2 + $0x738] sm:$0xff]
        %v527 = vld [vmem:[#allocation2 + $0x740] sm:$0xff]
        %v528 = vld [vmem:[#allocation2 + $0x748] sm:$0xff]
        %v529 = vld [vmem:[#allocation2 + $0x750] sm:$0xff]
        %v530 = vld [vmem:[#allocation2 + $0x758] sm:$0xff]
        %v531 = vld [vmem:[#allocation2 + $0x760] sm:$0xff]
        %v532 = vld [vmem:[#allocation2 + $0x768] sm:$0xff]
        %v533 = vld [vmem:[#allocation2 + $0x770] sm:$0xff]
        %v534 = vld [vmem:[#allocation2 + $0x778] sm:$0xff]
        %v535 = vld [vmem:[#allocation2 + $0x780] sm:$0xff]
        %v536 = vld [vmem:[#allocation2 + $0x788] sm:$0xff]
        %v537 = vld [vmem:[#allocation2 + $0x790] sm:$0xff]
        %v538 = vld [vmem:[#allocation2 + $0x798] sm:$0xff]
        %v539 = vld [vmem:[#allocation2 + $0x7a0] sm:$0xff]
        %v540 = vld [vmem:[#allocation2 + $0x7a8] sm:$0xff]
        %v541 = vld [vmem:[#allocation2 + $0x7b0] sm:$0xff]
        %v542 = vld [vmem:[#allocation2 + $0x7b8] sm:$0xff]
        %v543 = vld [vmem:[#allocation2 + $0x7c0] sm:$0xff]
        %v544 = vld [vmem:[#allocation2 + $0x7c8] sm:$0xff]
        %v545 = vld [vmem:[#allocation2 + $0x7d0] sm:$0xff]
        %v546 = vld [vmem:[#allocation2 + $0x7d8] sm:$0xff]
        %v547 = vld [vmem:[#allocation2 + $0x7e0] sm:$0xff]
        %v548 = vld [vmem:[#allocation2 + $0x7e8] sm:$0xff]
        %v549 = vld [vmem:[#allocation2 + $0x7f0] sm:$0xff]
        %v550 = vld [vmem:[#allocation2 + $0x7f8] sm:$0xff]
        %v552 = vcombine.high %v294, %v294
        %554 = vmatprep.subr.mxu0 %v296
        %555 = vmatpush1.msra.mxu0 %v295
        %556 = vmatprep.subr.mxu0 %v304
        %557 = vmatpush1.msra.mxu0 %v303
        %558 = vmatprep.subr.mxu0 %v312
        %559 = vmatpush1.msra.mxu0 %v311
        %560 = vmatprep.subr.mxu0 %v320
        %561 = vmatpush1.msra.mxu0 %v319
        %562 = vmatprep.subr.mxu0 %v328
        %563 = vmatpush1.msra.mxu0 %v327
        %564 = vmatprep.subr.mxu0 %v336
        %565 = vmatpush1.msra.mxu0 %v335
        %566 = vmatprep.subr.mxu0 %v344
        %567 = vmatpush1.msra.mxu0 %v343
        %568 = vmatprep.subr.mxu0 %v352
        %569 = vmatpush1.msra.mxu0 %v351
        %570 = vmatprep.subr.mxu0 %v360
        %571 = vmatpush1.msra.mxu0 %v359
        %572 = vmatprep.subr.mxu0 %v368
        %573 = vmatpush1.msra.mxu0 %v367
        %574 = vmatprep.subr.mxu0 %v376
        %575 = vmatpush1.msra.mxu0 %v375
        %576 = vmatprep.subr.mxu0 %v384
        %577 = vmatpush1.msra.mxu0 %v383
        %578 = vmatprep.subr.mxu0 %v392
        %579 = vmatpush1.msra.mxu0 %v391
        %580 = vmatprep.subr.mxu0 %v400
        %581 = vmatpush1.msra.mxu0 %v399
        %582 = vmatprep.subr.mxu0 %v408
        %583 = vmatpush1.msra.mxu0 %v407
        %584 = vmatprep.subr.mxu0 %v416
        %585 = vmatpush1.msra.mxu0 %v415
        %586 = vmatprep.subr.mxu0 %v424
        %587 = vmatpush1.msra.mxu0 %v423
        %588 = vmatprep.subr.mxu0 %v432
        %589 = vmatpush1.msra.mxu0 %v431
        %590 = vmatprep.subr.mxu0 %v440
        %591 = vmatpush1.msra.mxu0 %v439
        %592 = vmatprep.subr.mxu0 %v448
        %593 = vmatpush1.msra.mxu0 %v447
        %594 = vmatprep.subr.mxu0 %v456
        %595 = vmatpush1.msra.mxu0 %v455
        %596 = vmatprep.subr.mxu0 %v464
        %597 = vmatpush1.msra.mxu0 %v463
        %598 = vmatprep.subr.mxu0 %v472
        %599 = vmatpush1.msra.mxu0 %v471
        %600 = vmatprep.subr.mxu0 %v480
        %601 = vmatpush1.msra.mxu0 %v479
        %602 = vmatprep.subr.mxu0 %v488
        %603 = vmatpush1.msra.mxu0 %v487
        %604 = vmatprep.subr.mxu0 %v496
        %605 = vmatpush1.msra.mxu0 %v495
        %606 = vmatprep.subr.mxu0 %v504
        %607 = vmatpush1.msra.mxu0 %v503
        %608 = vmatprep.subr.mxu0 %v512
        %609 = vmatpush1.msra.mxu0 %v511
        %610 = vmatprep.subr.mxu0 %v520
        %611 = vmatpush1.msra.mxu0 %v519
        %612 = vmatprep.subr.mxu0 %v528
        %613 = vmatpush1.msra.mxu0 %v527
        %614 = vmatprep.subr.mxu0 %v536
        %615 = vmatpush1.msra.mxu0 %v535
        %616 = vmatprep.subr.mxu0 %v544
        %617 = vmatpush1.msra.mxu0 %v543
        %618 = vmatprep.mubr.f32.mxu0 %v552
        %619 = vmatmul.mubr.f32.gmra.mrb[0].mxu0 %v294
        %v620 = vpop.f32.mrb[0].mxu0
        %v621 = vadd.f32 0.0, %v620
        %v622 = vpop.f32.mrb[0].mxu0
        %v623 = vadd.f32 0.0, %v622
        %624 = vdwg.mxu0
        %625 = vmatprep.subr.mxu0 %v298
        %626 = vmatpush1.msra.mxu0 %v297
        %627 = vmatprep.subr.mxu0 %v306
        %628 = vmatpush1.msra.mxu0 %v305
        %629 = vmatprep.subr.mxu0 %v314
        %630 = vmatpush1.msra.mxu0 %v313
        %631 = vmatprep.subr.mxu0 %v322
        %632 = vmatpush1.msra.mxu0 %v321
        %633 = vmatprep.subr.mxu0 %v330
        %634 = vmatpush1.msra.mxu0 %v329
        %635 = vmatprep.subr.mxu0 %v338
        %636 = vmatpush1.msra.mxu0 %v337
        %637 = vmatprep.subr.mxu0 %v346
        %638 = vmatpush1.msra.mxu0 %v345
        %639 = vmatprep.subr.mxu0 %v354
        %640 = vmatpush1.msra.mxu0 %v353
        %641 = vmatprep.subr.mxu0 %v362
        %642 = vmatpush1.msra.mxu0 %v361
        %643 = vmatprep.subr.mxu0 %v370
        %644 = vmatpush1.msra.mxu0 %v369
        %645 = vmatprep.subr.mxu0 %v378
        %646 = vmatpush1.msra.mxu0 %v377
        %647 = vmatprep.subr.mxu0 %v386
        %648 = vmatpush1.msra.mxu0 %v385
        %649 = vmatprep.subr.mxu0 %v394
        %650 = vmatpush1.msra.mxu0 %v393
        %651 = vmatprep.subr.mxu0 %v402
        %652 = vmatpush1.msra.mxu0 %v401
        %653 = vmatprep.subr.mxu0 %v410
        %654 = vmatpush1.msra.mxu0 %v409
        %655 = vmatprep.subr.mxu0 %v418
        %656 = vmatpush1.msra.mxu0 %v417
        %657 = vmatprep.subr.mxu0 %v426
        %658 = vmatpush1.msra.mxu0 %v425
        %659 = vmatprep.subr.mxu0 %v434
        %660 = vmatpush1.msra.mxu0 %v433
        %661 = vmatprep.subr.mxu0 %v442
        %662 = vmatpush1.msra.mxu0 %v441
        %663 = vmatprep.subr.mxu0 %v450
        %664 = vmatpush1.msra.mxu0 %v449
        %665 = vmatprep.subr.mxu0 %v458
        %666 = vmatpush1.msra.mxu0 %v457
        %667 = vmatprep.subr.mxu0 %v466
        %668 = vmatpush1.msra.mxu0 %v465
        %669 = vmatprep.subr.mxu0 %v474
        %670 = vmatpush1.msra.mxu0 %v473
        %671 = vmatprep.subr.mxu0 %v482
        %672 = vmatpush1.msra.mxu0 %v481
        %673 = vmatprep.subr.mxu0 %v490
        %674 = vmatpush1.msra.mxu0 %v489
        %675 = vmatprep.subr.mxu0 %v498
        %676 = vmatpush1.msra.mxu0 %v497
        %677 = vmatprep.subr.mxu0 %v506
        %678 = vmatpush1.msra.mxu0 %v505
        %679 = vmatprep.subr.mxu0 %v514
        %680 = vmatpush1.msra.mxu0 %v513
        %681 = vmatprep.subr.mxu0 %v522
        %682 = vmatpush1.msra.mxu0 %v521
        %683 = vmatprep.subr.mxu0 %v530
        %684 = vmatpush1.msra.mxu0 %v529
        %685 = vmatprep.subr.mxu0 %v538
        %686 = vmatpush1.msra.mxu0 %v537
        %687 = vmatprep.subr.mxu0 %v546
        %688 = vmatpush1.msra.mxu0 %v545
        %689 = vmatprep.mubr.f32.mxu0 %v552
        %690 = vmatmul.mubr.f32.gmra.mrb[0].mxu0 %v294
        %v691 = vpop.f32.mrb[0].mxu0
        %v692 = vadd.f32 0.0, %v691
        %v693 = vpop.f32.mrb[0].mxu0
        %v694 = vadd.f32 0.0, %v693
        %695 = vdwg.mxu0
        %696 = vmatprep.subr.mxu0 %v300
        %697 = vmatpush1.msra.mxu0 %v299
        %698 = vmatprep.subr.mxu0 %v308
        %699 = vmatpush1.msra.mxu0 %v307
        %700 = vmatprep.subr.mxu0 %v316
        %701 = vmatpush1.msra.mxu0 %v315
        %702 = vmatprep.subr.mxu0 %v324
        %703 = vmatpush1.msra.mxu0 %v323
        %704 = vmatprep.subr.mxu0 %v332
        %705 = vmatpush1.msra.mxu0 %v331
        %706 = vmatprep.subr.mxu0 %v340
        %707 = vmatpush1.msra.mxu0 %v339
        %708 = vmatprep.subr.mxu0 %v348
        %709 = vmatpush1.msra.mxu0 %v347
        %710 = vmatprep.subr.mxu0 %v356
        %711 = vmatpush1.msra.mxu0 %v355
        %712 = vmatprep.subr.mxu0 %v364
        %713 = vmatpush1.msra.mxu0 %v363
        %714 = vmatprep.subr.mxu0 %v372
        %715 = vmatpush1.msra.mxu0 %v371
        %716 = vmatprep.subr.mxu0 %v380
        %717 = vmatpush1.msra.mxu0 %v379
        %718 = vmatprep.subr.mxu0 %v388
        %719 = vmatpush1.msra.mxu0 %v387
        %720 = vmatprep.subr.mxu0 %v396
        %721 = vmatpush1.msra.mxu0 %v395
        %722 = vmatprep.subr.mxu0 %v404
        %723 = vmatpush1.msra.mxu0 %v403
        %724 = vmatprep.subr.mxu0 %v412
        %725 = vmatpush1.msra.mxu0 %v411
        %726 = vmatprep.subr.mxu0 %v420
        %727 = vmatpush1.msra.mxu0 %v419
        %728 = vmatprep.subr.mxu0 %v428
        %729 = vmatpush1.msra.mxu0 %v427
        %730 = vmatprep.subr.mxu0 %v436
        %731 = vmatpush1.msra.mxu0 %v435
        %732 = vmatprep.subr.mxu0 %v444
        %733 = vmatpush1.msra.mxu0 %v443
        %734 = vmatprep.subr.mxu0 %v452
        %735 = vmatpush1.msra.mxu0 %v451
        %736 = vmatprep.subr.mxu0 %v460
        %737 = vmatpush1.msra.mxu0 %v459
        %738 = vmatprep.subr.mxu0 %v468
        %739 = vmatpush1.msra.mxu0 %v467
        %740 = vmatprep.subr.mxu0 %v476
        %741 = vmatpush1.msra.mxu0 %v475
        %742 = vmatprep.subr.mxu0 %v484
        %743 = vmatpush1.msra.mxu0 %v483
        %744 = vmatprep.subr.mxu0 %v492
        %745 = vmatpush1.msra.mxu0 %v491
        %746 = vmatprep.subr.mxu0 %v500
        %747 = vmatpush1.msra.mxu0 %v499
        %748 = vmatprep.subr.mxu0 %v508
        %749 = vmatpush1.msra.mxu0 %v507
        %750 = vmatprep.subr.mxu0 %v516
        %751 = vmatpush1.msra.mxu0 %v515
        %752 = vmatprep.subr.mxu0 %v524
        %753 = vmatpush1.msra.mxu0 %v523
        %754 = vmatprep.subr.mxu0 %v532
        %755 = vmatpush1.msra.mxu0 %v531
        %756 = vmatprep.subr.mxu0 %v540
        %757 = vmatpush1.msra.mxu0 %v539
        %758 = vmatprep.subr.mxu0 %v548
        %759 = vmatpush1.msra.mxu0 %v547
        %760 = vmatprep.mubr.f32.mxu0 %v552
        %761 = vmatmul.mubr.f32.gmra.mrb[0].mxu0 %v294
        %v762 = vpop.f32.mrb[0].mxu0
        %v763 = vadd.f32 0.0, %v762
        %v764 = vpop.f32.mrb[0].mxu0
        %v765 = vadd.f32 0.0, %v764
        %766 = vdwg.mxu0
        %767 = vmatprep.subr.mxu0 %v302
        %768 = vmatpush1.msra.mxu0 %v301
        %769 = vmatprep.subr.mxu0 %v310
        %770 = vmatpush1.msra.mxu0 %v309
        %771 = vmatprep.subr.mxu0 %v318
        %772 = vmatpush1.msra.mxu0 %v317
        %773 = vmatprep.subr.mxu0 %v326
        %774 = vmatpush1.msra.mxu0 %v325
        %775 = vmatprep.subr.mxu0 %v334
        %776 = vmatpush1.msra.mxu0 %v333
        %777 = vmatprep.subr.mxu0 %v342
        %778 = vmatpush1.msra.mxu0 %v341
        %779 = vmatprep.subr.mxu0 %v350
        %780 = vmatpush1.msra.mxu0 %v349
        %781 = vmatprep.subr.mxu0 %v358
        %782 = vmatpush1.msra.mxu0 %v357
        %783 = vmatprep.subr.mxu0 %v366
        %784 = vmatpush1.msra.mxu0 %v365
        %785 = vmatprep.subr.mxu0 %v374
        %786 = vmatpush1.msra.mxu0 %v373
        %787 = vmatprep.subr.mxu0 %v382
        %788 = vmatpush1.msra.mxu0 %v381
        %789 = vmatprep.subr.mxu0 %v390
        %790 = vmatpush1.msra.mxu0 %v389
        %791 = vmatprep.subr.mxu0 %v398
        %792 = vmatpush1.msra.mxu0 %v397
        %793 = vmatprep.subr.mxu0 %v406
        %794 = vmatpush1.msra.mxu0 %v405
        %795 = vmatprep.subr.mxu0 %v414
        %796 = vmatpush1.msra.mxu0 %v413
        %797 = vmatprep.subr.mxu0 %v422
        %798 = vmatpush1.msra.mxu0 %v421
        %799 = vmatprep.subr.mxu0 %v430
        %800 = vmatpush1.msra.mxu0 %v429
        %801 = vmatprep.subr.mxu0 %v438
        %802 = vmatpush1.msra.mxu0 %v437
        %803 = vmatprep.subr.mxu0 %v446
        %804 = vmatpush1.msra.mxu0 %v445
        %805 = vmatprep.subr.mxu0 %v454
        %806 = vmatpush1.msra.mxu0 %v453
        %807 = vmatprep.subr.mxu0 %v462
        %808 = vmatpush1.msra.mxu0 %v461
        %809 = vmatprep.subr.mxu0 %v470
        %810 = vmatpush1.msra.mxu0 %v469
        %811 = vmatprep.subr.mxu0 %v478
        %812 = vmatpush1.msra.mxu0 %v477
        %813 = vmatprep.subr.mxu0 %v486
        %814 = vmatpush1.msra.mxu0 %v485
        %815 = vmatprep.subr.mxu0 %v494
        %816 = vmatpush1.msra.mxu0 %v493
        %817 = vmatprep.subr.mxu0 %v502
        %818 = vmatpush1.msra.mxu0 %v501
        %819 = vmatprep.subr.mxu0 %v510
        %820 = vmatpush1.msra.mxu0 %v509
        %821 = vmatprep.subr.mxu0 %v518
        %822 = vmatpush1.msra.mxu0 %v517
        %823 = vmatprep.subr.mxu0 %v526
        %824 = vmatpush1.msra.mxu0 %v525
        %825 = vmatprep.subr.mxu0 %v534
        %826 = vmatpush1.msra.mxu0 %v533
        %827 = vmatprep.subr.mxu0 %v542
        %828 = vmatpush1.msra.mxu0 %v541
        %829 = vmatprep.subr.mxu0 %v550
        %830 = vmatpush1.msra.mxu0 %v549
        %831 = vmatprep.mubr.f32.mxu0 %v552
        %832 = vmatmul.mubr.f32.gmra.mrb[0].mxu0 %v294
        %v833 = vpop.f32.mrb[0].mxu0
        %v834 = vadd.f32 0.0, %v833
        %v835 = vpop.f32.mrb[0].mxu0
        %v836 = vadd.f32 0.0, %v835
        %837 = vdwg.mxu0
        %v840 = vrot.slane %v692, 7
        %v841 = vrot.slane %v694, 7
        %v846 = vrot.slane %v763, 6
        %v847 = vrot.slane %v765, 6
        %v852 = vrot.slane %v834, 5
        %v853 = vrot.slane %v836, 5
        %v858 = vrot.slane %v621, 5
        %v859 = vrot.slane %v623, 5
        %v862 = vrot.slane %v692, 4
        %v863 = vrot.slane %v694, 4
        %v866 = vrot.slane %v763, 3
        %v867 = vrot.slane %v765, 3
        %v870 = vrot.slane %v834, 2
        %v871 = vrot.slane %v836, 2
        %vm874 = vcmask 1040384
        %v875 = vsel %vm874, %v621, %v840
        %v876 = vsel %vm874, %v623, %v841
        %vm877 = vcmask 1041408
        %v878 = vsel %vm877, %v875, %v846
        %v879 = vsel %vm877, %v876, %v847
        %vm880 = vcmask 1042432
        %v881 = vsel %vm880, %v878, %v852
        %v882 = vsel %vm880, %v879, %v853
        %vm883 = vcmask 1043456
        %v884 = vsel %vm883, %v881, %v858
        %v885 = vsel %vm883, %v882, %v859
        %vm886 = vcmask 1044480
        %v887 = vsel %vm886, %v884, %v862
        %v888 = vsel %vm886, %v885, %v863
        %vm889 = vcmask 1045504
        %v890 = vsel %vm889, %v887, %v866
        %v891 = vsel %vm889, %v888, %v867
        %vm892 = vcmask 1046528
        %v893 = vsel %vm892, %v890, %v870
        %v894 = vsel %vm892, %v891, %v871
        %v895 = vrot.slane %v621, 2
        %v896 = vrot.slane %v623, 2
        %v899 = vrot.slane %v692, 1
        %v900 = vrot.slane %v694, 1
        %v903 = vrot.slane %v834, 7
        %v904 = vrot.slane %v836, 7
        %v907 = vrot.slane %v621, 7
        %v908 = vrot.slane %v623, 7
        %v911 = vrot.slane %v692, 6
        %v912 = vrot.slane %v694, 6
        %v915 = vrot.slane %v763, 5
        %v916 = vrot.slane %v765, 5
        %v919 = vrot.slane %v834, 4
        %v920 = vrot.slane %v836, 4
        %v923 = vsel %vm874, %v895, %v899
        %v924 = vsel %vm874, %v896, %v900
        %v925 = vsel %vm877, %v923, %v763
        %v926 = vsel %vm877, %v924, %v765
        %v927 = vsel %vm880, %v925, %v903
        %v928 = vsel %vm880, %v926, %v904
        %v929 = vsel %vm883, %v927, %v907
        %v930 = vsel %vm883, %v928, %v908
        %v931 = vsel %vm886, %v929, %v911
        %v932 = vsel %vm886, %v930, %v912
        %v933 = vsel %vm889, %v931, %v915
        %v934 = vsel %vm889, %v932, %v916
        %v935 = vsel %vm892, %v933, %v919
        %v936 = vsel %vm892, %v934, %v920
        %v937 = vld [vmem:[%s2] sm:$0xff]
        %v938 = vld [vmem:[%s2 + $0x8] sm:$0xff]
        %v939 = vld [vmem:[%s2 + $0x10] sm:$0x1]
        %v940 = vld [vmem:[%s2 + $0x18] sm:$0x1]
        %941 = vrot.lane.b32.xlu0 %v935, 17
        %v942 = vpop.permute.xlu0 %941
        %943 = vrot.lane.b32.xlu0 %v936, 17
        %v944 = vpop.permute.xlu0 %943
        %v945 = vlaneseq
        %v946 = vand.u32 %v945, 127
        %vm947 = vcmp.lt.s32.totalorder %v946, 17
        %v948 = vsel %vm947, %v942, %v944
        %v949 = vsel %vm947, %v944, %v942
        %v950 = vlaneseq
        %v951 = vshrl.u32 %v950, 7
        %v952 = vsub.s32 0, %v951
        %v953 = vrot.slane %v937, %v952
        %v954 = vlaneseq
        %v955 = vshrl.u32 %v954, 7
        %v956 = vsub.s32 0, %v955
        %v957 = vrot.slane %v938, %v956
        %v958 = vmul.f32 %v949, %v953
        %v959 = vmul.f32 %v948, %v957
        %960 = vrot.lane.b32.xlu0 %v935, 16
        %v961 = vpop.permute.xlu0 %960
        %962 = vrot.lane.b32.xlu0 %v936, 16
        %v963 = vpop.permute.xlu0 %962
        %vm964 = vcmp.lt.s32.totalorder %v946, 16
        %v965 = vsel %vm964, %v961, %v963
        %v966 = vsel %vm964, %v963, %v961
        %v967 = vlaneseq
        %v968 = vshrl.u32 %v967, 7
        %v969 = vsub.s32 1, %v968
        %v970 = vrot.slane %v937, %v969
        %v971 = vlaneseq
        %v972 = vshrl.u32 %v971, 7
        %v973 = vsub.s32 1, %v972
        %v974 = vrot.slane %v938, %v973
        %v975 = vmul.f32 %v966, %v970
        %v976 = vmul.f32 %v965, %v974
        %977 = vrot.lane.b32.xlu0 %v935, 15
        %v978 = vpop.permute.xlu0 %977
        %979 = vrot.lane.b32.xlu0 %v936, 15
        %v980 = vpop.permute.xlu0 %979
        %vm981 = vcmp.lt.s32.totalorder %v946, 15
        %v982 = vsel %vm981, %v978, %v980
        %v983 = vsel %vm981, %v980, %v978
        %v984 = vlaneseq
        %v985 = vshrl.u32 %v984, 7
        %v986 = vsub.s32 2, %v985
        %v987 = vrot.slane %v937, %v986
        %v988 = vlaneseq
        %v989 = vshrl.u32 %v988, 7
        %v990 = vsub.s32 2, %v989
        %v991 = vrot.slane %v938, %v990
        %v992 = vmul.f32 %v983, %v987
        %v993 = vmul.f32 %v982, %v991
        %994 = vrot.lane.b32.xlu0 %v935, 1
        %v995 = vpop.permute.xlu0 %994
        %996 = vrot.lane.b32.xlu0 %v936, 1
        %v997 = vpop.permute.xlu0 %996
        %vm998 = vcmp.lt.s32.totalorder %v946, 1
        %v999 = vsel %vm998, %v995, %v997
        %v1000 = vsel %vm998, %v997, %v995
        %v1001 = vlaneseq
        %v1002 = vshrl.u32 %v1001, 7
        %v1003 = vsub.s32 3, %v1002
        %v1004 = vrot.slane %v937, %v1003
        %v1005 = vlaneseq
        %v1006 = vshrl.u32 %v1005, 7
        %v1007 = vsub.s32 3, %v1006
        %v1008 = vrot.slane %v938, %v1007
        %v1009 = vmul.f32 %v1000, %v1004
        %v1010 = vmul.f32 %v999, %v1008
        %1011 = vrot.lane.b32.xlu0 %v935, 127
        %v1012 = vpop.permute.xlu0 %1011
        %1013 = vrot.lane.b32.xlu0 %v936, 127
        %v1014 = vpop.permute.xlu0 %1013
        %vm1015 = vcmp.lt.s32.totalorder %v946, 127
        %v1016 = vsel %vm1015, %v1012, %v1014
        %v1017 = vsel %vm1015, %v1014, %v1012
        %v1018 = vlaneseq
        %v1019 = vshrl.u32 %v1018, 7
        %v1020 = vsub.s32 5, %v1019
        %v1021 = vrot.slane %v937, %v1020
        %v1022 = vlaneseq
        %v1023 = vshrl.u32 %v1022, 7
        %v1024 = vsub.s32 5, %v1023
        %v1025 = vrot.slane %v938, %v1024
        %v1026 = vmul.f32 %v1016, %v1021
        %v1027 = vmul.f32 %v1017, %v1025
        %1028 = vrot.lane.b32.xlu0 %v935, 113
        %v1029 = vpop.permute.xlu0 %1028
        %1030 = vrot.lane.b32.xlu0 %v936, 113
        %v1031 = vpop.permute.xlu0 %1030
        %vm1032 = vcmp.lt.s32.totalorder %v946, 113
        %v1033 = vsel %vm1032, %v1029, %v1031
        %v1034 = vsel %vm1032, %v1031, %v1029
        %v1035 = vlaneseq
        %v1036 = vshrl.u32 %v1035, 7
        %v1037 = vsub.s32 6, %v1036
        %v1038 = vrot.slane %v937, %v1037
        %v1039 = vlaneseq
        %v1040 = vshrl.u32 %v1039, 7
        %v1041 = vsub.s32 6, %v1040
        %v1042 = vrot.slane %v938, %v1041
        %v1043 = vmul.f32 %v1033, %v1038
        %v1044 = vmul.f32 %v1034, %v1042
        %1045 = vrot.lane.b32.xlu0 %v935, 112
        %v1046 = vpop.permute.xlu0 %1045
        %1047 = vrot.lane.b32.xlu0 %v936, 112
        %v1048 = vpop.permute.xlu0 %1047
        %vm1049 = vcmp.lt.s32.totalorder %v946, 112
        %v1050 = vsel %vm1049, %v1046, %v1048
        %v1051 = vsel %vm1049, %v1048, %v1046
        %v1052 = vlaneseq
        %v1053 = vshrl.u32 %v1052, 7
        %v1054 = vsub.s32 7, %v1053
        %v1055 = vrot.slane %v937, %v1054
        %v1056 = vlaneseq
        %v1057 = vshrl.u32 %v1056, 7
        %v1058 = vsub.s32 7, %v1057
        %v1059 = vrot.slane %v938, %v1058
        %v1060 = vmul.f32 %v1050, %v1055
        %v1061 = vmul.f32 %v1051, %v1059
        %1062 = vrot.lane.b32.xlu0 %v935, 111
        %v1063 = vpop.permute.xlu0 %1062
        %1064 = vrot.lane.b32.xlu0 %v936, 111
        %v1065 = vpop.permute.xlu0 %1064
        %vm1066 = vcmp.lt.s32.totalorder %v946, 111
        %v1067 = vsel %vm1066, %v1063, %v1065
        %v1068 = vsel %vm1066, %v1065, %v1063
        %v1069 = vlaneseq
        %v1070 = vshrl.u32 %v1069, 7
        %v1071 = vsub.s32 0, %v1070
        %v1072 = vrot.slane %v939, %v1071
        %v1073 = vlaneseq
        %v1074 = vshrl.u32 %v1073, 7
        %v1075 = vsub.s32 0, %v1074
        %v1076 = vrot.slane %v940, %v1075
        %v1077 = vmul.f32 %v1067, %v1072
        %v1078 = vmul.f32 %v1068, %v1076
        %v1079 = vld [vmem:[%s3] sm:$0xff]
        %v1080 = vld [vmem:[%s4] sm:$0xff]
        %1082 = vset.pattern.permute.xlu0 0
        %1083 = vperm.xlu0 %1082, %v1080
        %v1084 = vpop.permute.xlu0 %1083
        %vm1086 = vcmask 588800
        %v1088 = vsel %vm1086, %v1079, 0
        %1090 = vmatprep.subr.mxu0 %v959
        %1091 = vmatpush1.msra.mxu0 %v958
        %1092 = vmatprep.subr.mxu0 %v976
        %1093 = vmatpush1.msra.mxu0 %v975
        %1094 = vmatprep.subr.mxu0 %v993
        %1095 = vmatpush1.msra.mxu0 %v992
        %1096 = vmatprep.subr.mxu0 %v1010
        %1097 = vmatpush1.msra.mxu0 %v1009
        %1098 = vmatprep.subr.mxu0 %v936
        %1099 = vmatpush1.msra.mxu0 %v935
        %1100 = vmatprep.subr.mxu0 %v1027
        %1101 = vmatpush1.msra.mxu0 %v1026
        %1102 = vmatprep.subr.mxu0 %v1044
        %1103 = vmatpush1.msra.mxu0 %v1043
        %1104 = vmatprep.subr.mxu0 %v1061
        %1105 = vmatpush1.msra.mxu0 %v1060
        %1106 = vmatprep.subr.mxu0 %v1078
        %1107 = vmatpush1.msra.mxu0 %v1077
        %1108 = vmatprep.subr.mxu0 0.0
        %1109 = vmatpush1.msra.mxu0 0.0
        %1110 = vmatprep.subr.mxu0 0.0
        %1111 = vmatpush1.msra.mxu0 0.0
        %1112 = vmatprep.subr.mxu0 0.0
        %1113 = vmatpush1.msra.mxu0 0.0
        %1114 = vmatprep.subr.mxu0 0.0
        %1115 = vmatpush1.msra.mxu0 0.0
        %1116 = vmatprep.subr.mxu0 0.0
        %1117 = vmatpush1.msra.mxu0 0.0
        %1118 = vmatprep.subr.mxu0 0.0
        %1119 = vmatpush1.msra.mxu0 0.0
        %1120 = vmatprep.subr.mxu0 0.0
        %1121 = vmatpush1.msra.mxu0 0.0
        %1122 = vmatprep.subr.mxu0 0.0
        %1123 = vmatpush1.msra.mxu0 0.0
        %1124 = vmatprep.subr.mxu0 0.0
        %1125 = vmatpush1.msra.mxu0 0.0
        %1126 = vmatprep.subr.mxu0 0.0
        %1127 = vmatpush1.msra.mxu0 0.0
        %1128 = vmatprep.subr.mxu0 0.0
        %1129 = vmatpush1.msra.mxu0 0.0
        %1130 = vmatprep.subr.mxu0 0.0
        %1131 = vmatpush1.msra.mxu0 0.0
        %1132 = vmatprep.subr.mxu0 0.0
        %1133 = vmatpush1.msra.mxu0 0.0
        %1134 = vmatprep.subr.mxu0 0.0
        %1135 = vmatpush1.msra.mxu0 0.0
        %1136 = vmatprep.subr.mxu0 0.0
        %1137 = vmatpush1.msra.mxu0 0.0
        %1138 = vmatprep.subr.mxu0 0.0
        %1139 = vmatpush1.msra.mxu0 0.0
        %1140 = vmatprep.subr.mxu0 0.0
        %1141 = vmatpush1.msra.mxu0 0.0
        %1142 = vmatprep.subr.mxu0 0.0
        %1143 = vmatpush1.msra.mxu0 0.0
        %1144 = vmatprep.subr.mxu0 0.0
        %1145 = vmatpush1.msra.mxu0 0.0
        %1146 = vmatprep.subr.mxu0 0.0
        %1147 = vmatpush1.msra.mxu0 0.0
        %1148 = vmatprep.subr.mxu0 0.0
        %1149 = vmatpush1.msra.mxu0 0.0
        %1150 = vmatprep.subr.mxu0 0.0
        %1151 = vmatpush1.msra.mxu0 0.0
        %1152 = vmatprep.subr.mxu0 0.0
        %1153 = vmatpush1.msra.mxu0 0.0
        %1154 = vmatprep.mubr.f32.mxu0 0.0
        %1155 = vmatmul.mubr.f32.gmra.mrb[0].mxu0 %v1088
        %v1156 = vpop.f32.mrb[0].mxu0
        %v1157 = vadd.f32 %v1084, %v1156
        %v1158 = vpop.f32.mrb[0].mxu0
        %v1159 = vadd.f32 %v1084, %v1158
        %1160 = vdwg.mxu0
        %v1161 = vadd.f32 %v893, %v1157
        %v1162 = vadd.f32 %v894, %v1159
        %1163 = vst [vmem:[%s293] sm:$0xff] %v1161
        %1164 = vst [vmem:[%s293 + $0x8] sm:$0xff] %v1162
        %1165 = vrot.lane.b32.xlu0 %v1161, 17
        %v1166 = vpop.permute.xlu0 %1165
        %1167 = vrot.lane.b32.xlu0 %v1162, 17
        %v1168 = vpop.permute.xlu0 %1167
        %v1169 = vsel %vm947, %v1166, %v1168
        %v1170 = vsel %vm947, %v1168, %v1166
        %v1171 = vmul.f32 %v1170, %v953
        %v1172 = vmul.f32 %v1169, %v957
        %1173 = vrot.lane.b32.xlu0 %v1161, 16
        %v1174 = vpop.permute.xlu0 %1173
        %1175 = vrot.lane.b32.xlu0 %v1162, 16
        %v1176 = vpop.permute.xlu0 %1175
        %v1177 = vsel %vm964, %v1174, %v1176
        %v1178 = vsel %vm964, %v1176, %v1174
        %v1179 = vmul.f32 %v1178, %v970
        %v1180 = vmul.f32 %v1177, %v974
        %1181 = vrot.lane.b32.xlu0 %v1161, 15
        %v1182 = vpop.permute.xlu0 %1181
        %1183 = vrot.lane.b32.xlu0 %v1162, 15
        %v1184 = vpop.permute.xlu0 %1183
        %v1185 = vsel %vm981, %v1182, %v1184
        %v1186 = vsel %vm981, %v1184, %v1182
        %v1187 = vmul.f32 %v1186, %v987
        %v1188 = vmul.f32 %v1185, %v991
        %1189 = vrot.lane.b32.xlu0 %v1161, 1
        %v1190 = vpop.permute.xlu0 %1189
        %1191 = vrot.lane.b32.xlu0 %v1162, 1
        %v1192 = vpop.permute.xlu0 %1191
        %v1193 = vsel %vm998, %v1190, %v1192
        %v1194 = vsel %vm998, %v1192, %v1190
        %v1195 = vmul.f32 %v1194, %v1004
        %v1196 = vmul.f32 %v1193, %v1008
        %1197 = vrot.lane.b32.xlu0 %v1161, 127
        %v1198 = vpop.permute.xlu0 %1197
        %1199 = vrot.lane.b32.xlu0 %v1162, 127
        %v1200 = vpop.permute.xlu0 %1199
        %v1201 = vsel %vm1015, %v1198, %v1200
        %v1202 = vsel %vm1015, %v1200, %v1198
        %v1203 = vmul.f32 %v1201, %v1021
        %v1204 = vmul.f32 %v1202, %v1025
        %1205 = vrot.lane.b32.xlu0 %v1161, 113
        %v1206 = vpop.permute.xlu0 %1205
        %1207 = vrot.lane.b32.xlu0 %v1162, 113
        %v1208 = vpop.permute.xlu0 %1207
        %v1209 = vsel %vm1032, %v1206, %v1208
        %v1210 = vsel %vm1032, %v1208, %v1206
        %v1211 = vmul.f32 %v1209, %v1038
        %v1212 = vmul.f32 %v1210, %v1042
        %1213 = vrot.lane.b32.xlu0 %v1161, 112
        %v1214 = vpop.permute.xlu0 %1213
        %1215 = vrot.lane.b32.xlu0 %v1162, 112
        %v1216 = vpop.permute.xlu0 %1215
        %v1217 = vsel %vm1049, %v1214, %v1216
        %v1218 = vsel %vm1049, %v1216, %v1214
        %v1219 = vmul.f32 %v1217, %v1055
        %v1220 = vmul.f32 %v1218, %v1059
        %1221 = vrot.lane.b32.xlu0 %v1161, 111
        %v1222 = vpop.permute.xlu0 %1221
        %1223 = vrot.lane.b32.xlu0 %v1162, 111
        %v1224 = vpop.permute.xlu0 %1223
        %v1225 = vsel %vm1066, %v1222, %v1224
        %v1226 = vsel %vm1066, %v1224, %v1222
        %v1227 = vmul.f32 %v1225, %v1072
        %v1228 = vmul.f32 %v1226, %v1076
        %v1229 = vld [vmem:[%s5] sm:$0xff]
        %v1230 = vld [vmem:[%s6] sm:$0xff]
        %1232 = vset.pattern.permute.xlu0 0
        %1233 = vperm.xlu0 %1232, %v1230
        %v1234 = vpop.permute.xlu0 %1233
        %v1237 = vsel %vm1086, %v1229, 0
        %1239 = vmatprep.subr.mxu0 %v1172
        %1240 = vmatpush1.msra.mxu0 %v1171
        %1241 = vmatprep.subr.mxu0 %v1180
        %1242 = vmatpush1.msra.mxu0 %v1179
        %1243 = vmatprep.subr.mxu0 %v1188
        %1244 = vmatpush1.msra.mxu0 %v1187
        %1245 = vmatprep.subr.mxu0 %v1196
        %1246 = vmatpush1.msra.mxu0 %v1195
        %1247 = vmatprep.subr.mxu0 %v1162
        %1248 = vmatpush1.msra.mxu0 %v1161
        %1249 = vmatprep.subr.mxu0 %v1204
        %1250 = vmatpush1.msra.mxu0 %v1203
        %1251 = vmatprep.subr.mxu0 %v1212
        %1252 = vmatpush1.msra.mxu0 %v1211
        %1253 = vmatprep.subr.mxu0 %v1220
        %1254 = vmatpush1.msra.mxu0 %v1219
        %1255 = vmatprep.subr.mxu0 %v1228
        %1256 = vmatpush1.msra.mxu0 %v1227
        %1257 = vmatprep.subr.mxu0 0.0
        %1258 = vmatpush1.msra.mxu0 0.0
        %1259 = vmatprep.subr.mxu0 0.0
        %1260 = vmatpush1.msra.mxu0 0.0
        %1261 = vmatprep.subr.mxu0 0.0
        %1262 = vmatpush1.msra.mxu0 0.0
        %1263 = vmatprep.subr.mxu0 0.0
        %1264 = vmatpush1.msra.mxu0 0.0
        %1265 = vmatprep.subr.mxu0 0.0
        %1266 = vmatpush1.msra.mxu0 0.0
        %1267 = vmatprep.subr.mxu0 0.0
        %1268 = vmatpush1.msra.mxu0 0.0
        %1269 = vmatprep.subr.mxu0 0.0
        %1270 = vmatpush1.msra.mxu0 0.0
        %1271 = vmatprep.subr.mxu0 0.0
        %1272 = vmatpush1.msra.mxu0 0.0
        %1273 = vmatprep.subr.mxu0 0.0
        %1274 = vmatpush1.msra.mxu0 0.0
        %1275 = vmatprep.subr.mxu0 0.0
        %1276 = vmatpush1.msra.mxu0 0.0
        %1277 = vmatprep.subr.mxu0 0.0
        %1278 = vmatpush1.msra.mxu0 0.0
        %1279 = vmatprep.subr.mxu0 0.0
        %1280 = vmatpush1.msra.mxu0 0.0
        %1281 = vmatprep.subr.mxu0 0.0
        %1282 = vmatpush1.msra.mxu0 0.0
        %1283 = vmatprep.subr.mxu0 0.0
        %1284 = vmatpush1.msra.mxu0 0.0
        %1285 = vmatprep.subr.mxu0 0.0
        %1286 = vmatpush1.msra.mxu0 0.0
        %1287 = vmatprep.subr.mxu0 0.0
        %1288 = vmatpush1.msra.mxu0 0.0
        %1289 = vmatprep.subr.mxu0 0.0
        %1290 = vmatpush1.msra.mxu0 0.0
        %1291 = vmatprep.subr.mxu0 0.0
        %1292 = vmatpush1.msra.mxu0 0.0
        %1293 = vmatprep.subr.mxu0 0.0
        %1294 = vmatpush1.msra.mxu0 0.0
        %1295 = vmatprep.subr.mxu0 0.0
        %1296 = vmatpush1.msra.mxu0 0.0
        %1297 = vmatprep.subr.mxu0 0.0
        %1298 = vmatpush1.msra.mxu0 0.0
        %1299 = vmatprep.subr.mxu0 0.0
        %1300 = vmatpush1.msra.mxu0 0.0
        %1301 = vmatprep.subr.mxu0 0.0
        %1302 = vmatpush1.msra.mxu0 0.0
        %1303 = vmatprep.mubr.f32.mxu0 0.0
        %1304 = vmatmul.mubr.f32.gmra.mrb[0].mxu0 %v1237
        %v1305 = vpop.f32.mrb[0].mxu0
        %v1306 = vadd.f32 %v1234, %v1305
        %v1307 = vpop.f32.mrb[0].mxu0
        %v1308 = vadd.f32 %v1234, %v1307
        %1309 = vdwg.mxu0
        %v1310 = vadd.f32 %v935, %v1306
        %v1311 = vadd.f32 %v936, %v1308
        %1312 = vst [vmem:[%s293 + $0x10] sm:$0xff] %v1310
        %1313 = vst [vmem:[%s293 + $0x18] sm:$0xff] %v1311
        %p1314 = scmp.lt.s32.totalorder %s19, 1
        %s1315 = scalar_select %p1314, %s19, 1
        %s1316 = smul.addr %s1315, 4
        %s1317 = smul.addr %s1316, 8
        %s1318 = scalar_lea.vmem %s7, %s1317
        // Predicated region
        $region53: #{_lambda_.1} parent=47 // pred_check
          %p1319 = pneg %p189
        $region54: #{_lambda_.1} parent=47 // pred_check_branch
          %1321 = sbr.rel (%p1319) target = $region56
        $region55: #{_lambda_.1} parent=47 // pred_region
          _
        $region56: #{_lambda_.1} parent=47 // pred_fallthru
          _
      $region48: #{_lambda_.1} parent=5 // pred_fallthru
        _
      %p1322 = scmp.le.s32.totalorder 2, %s14
      // Predicated region
      $region57: #{_lambda_.1} parent=5 // pred_check
        %p1323 = pneg %p1322
      $region58: #{_lambda_.1} parent=5 // pred_check_branch
        %1325 = sbr.rel (%p1323) target = $region60
      $region59: #{_lambda_.1} parent=5 // pred_region
        %s1326 = ssub.s32 %s14, 2
        // Predicated region
        $region61: #{_lambda_.1} parent=59 // pred_check
          %p1327 = pneg %p195
        $region62: #{_lambda_.1} parent=59 // pred_check_branch
          %1329 = sbr.rel (%p1327) target = $region64
        $region63: #{_lambda_.1} parent=59 // pred_region
          %p1330 = scmp.lt.s32.totalorder %s20, 1
          %s1331 = scalar_select %p1330, %s20, 1
          %s1332 = smul.addr %s1331, 4
          %s1333 = smul.addr %s1332, 8
          %s1334 = scalar_lea.vmem %s7, %s1333
        $region64: #{_lambda_.1} parent=59 // pred_fallthru
          _
      $region60: #{_lambda_.1} parent=5 // pred_fallthru
        _
    $region6: #{_lambda_.1} parent=1 // loop_footer
      %s18 = sadd.s32 1, %s14
    $region7: #{_lambda_.1} parent=1 // loop_footer_branch
      %13 = sbr.rel target = $region3
    $region8: #{_lambda_.1} parent=1 // loop_exit
      _
    %1335 = vsyncpa [#allocation3], 1
    %s1336 = scalar_lea.sflag [#allocation3], 1
    %1337 = vsyncpa %s1336, 1

</llo_original>
